<compile_context>
chip_gen: v7x
topology: tpu7x:2x2x1
jax: 0.10.0
libtpu: 0.0.40
codegen_flags: <defaults>
</compile_context>

<pallas_src>
import jax
import jax.numpy as jnp
from jax import lax
from jax.experimental import pallas as pl
from jax.experimental.pallas import tpu as pltpu

NUM_LAYERS = 2
LN_EPS = 1e-5
_INV_SQRT2 = 0.7071067811865476

# Row layout of the packed H-wide small-parameter slab (f32, shape (16, H)).
ROW_BP = 0          # input-projection bias
ROW_BATTN = 1       # + l : folded attention bias  (bv @ Wo + bo)
ROW_BB2 = 3         # + l : encoder-FFN second bias
ROW_G1 = 5          # + l : norm1 gamma
ROW_BE1 = 7         # + l : norm1 beta
ROW_G2 = 9          # + l : norm2 gamma
ROW_BE2 = 11        # + l : norm2 beta
ROW_BF2 = 13        # residual-FFN second bias
ROW_BHEAD = 14      # fused (padded) output-head bias
N_ROWS_H = 16

# Row layout of the packed F-wide slab (f32, shape (8, F)), F = 4*H.
ROW_BB1 = 0         # + l : encoder-FFN first bias
ROW_BF1 = 2         # residual-FFN first bias
N_ROWS_F = 8


def _layernorm(h, gamma, beta):
    mu = jnp.mean(h, axis=-1, keepdims=True)
    var = jnp.mean((h - mu) ** 2, axis=-1, keepdims=True)
    return (h - mu) * lax.rsqrt(var + LN_EPS) * gamma + beta


def _gelu_exact(t):
    # nn.GELU() default (approximate='none'): 0.5 * x * (1 + erf(x / sqrt(2)))
    return 0.5 * t * (1.0 + lax.erf(t * _INV_SQRT2))


def financial_transformer_kernel(
    # inputs (x is pre-cast to bf16 in the wrapper)
    x_ref, wp_ref, m_ref, w1_ref, w2_ref, wf1_ref, wf2_ref, wh_ref,
    bh_ref, bf_ref,
    # output: fused heads, lane-dense (TB, H); cols 0/1 = 1d/30d predictions
    y_ref,
):
    f32, bf16 = jnp.float32, jnp.bfloat16
    bh = bh_ref[...]
    bfs = bf_ref[...]

    def row_h(r):
        return bh[r:r + 1, :]

    def row_f(r):
        return bfs[r:r + 1, :]

    # input_projection: (TB, D_in) @ (D_in, H) + bp
    h = jnp.dot(x_ref[...], wp_ref[...],
                preferred_element_type=f32) + row_h(ROW_BP)

    # TransformerEncoder, 2 post-norm layers, seq_len == 1:
    # self-attention folds to  h + h @ (Wv Wo) + (bv Wo + bo).
    # Residual add stays in f32; only the matmul operand is bf16.
    for l in range(NUM_LAYERS):
        a = h + jnp.dot(h.astype(bf16), m_ref[l],
                        preferred_element_type=f32) + row_h(ROW_BATTN + l)
        h = _layernorm(a, row_h(ROW_G1 + l), row_h(ROW_BE1 + l))

        # encoder-layer feed-forward (default activation: ReLU), dropout = id.
        ff = jnp.dot(h.astype(bf16), w1_ref[l],
                     preferred_element_type=f32) + row_f(ROW_BB1 + l)
        ff = jnp.maximum(ff, 0.0)
        ff = jnp.dot(ff.astype(bf16), w2_ref[l],
                     preferred_element_type=f32) + row_h(ROW_BB2 + l)
        h = _layernorm(h + ff, row_h(ROW_G2 + l), row_h(ROW_BE2 + l))

    # transpose(1,2) + AdaptiveAvgPool1d(1) + squeeze over seq_len=1: identity.

    # residual FFN branch: Linear -> GELU(exact) -> Dropout(id) -> Linear
    t = jnp.dot(h.astype(bf16), wf1_ref[...],
                preferred_element_type=f32) + row_f(ROW_BF1)
    t = _gelu_exact(t)
    t = jnp.dot(t.astype(bf16), wf2_ref[...],
                preferred_element_type=f32) + row_h(ROW_BF2)
    h = h + t

    # fused, zero-padded output heads -> single lane-dense unmasked store
    y_ref[...] = jnp.dot(h.astype(bf16), wh_ref[...],
                         preferred_element_type=f32) + row_h(ROW_BHEAD)


def _const_spec(shape):
    """Whole-array block, constant block index -> fetched once, stays resident."""
    nd = len(shape)
    return pl.BlockSpec(shape, lambda i, _nd=nd: (0,) * _nd)


def _round_up(x, m):
    return ((x + m - 1) // m) * m


_PACKED_ORDER = ("wp", "m", "w1", "w2", "wf1", "wf2", "wh", "bh", "bf")


def pack_params(p):
    """Fold / pack / cast the raw (pre-transposed) parameters for the kernel."""
    H = p["wp"].shape[1]
    F = 4 * H
    L = NUM_LAYERS
    f32, bf16 = jnp.float32, jnp.bfloat16

    # Fold the degenerate (seq_len==1) attention.  NOTE: no identity folded in;
    # the kernel keeps the residual add in f32.
    m = jnp.stack([p["wv"][l] @ p["wo"][l] for l in range(L)])
    b_attn = [(p["bv"][l] @ p["wo"][l] + p["bo"][l])[0] for l in range(L)]

    # Fused, lane-padded output heads: cols 0 / 1 hold the 1d / 30d heads.
    wh = jnp.zeros((H, H), f32)
    wh = wh.at[:, 0:1].set(p["wo1"]).at[:, 1:2].set(p["wo30"])
    bhead = jnp.zeros((H,), f32)
    bhead = bhead.at[0].set(p["bo1"][0, 0]).at[1].set(p["bo30"][0, 0])

    # Pack all H-wide row parameters into one slab (single DMA).
    bh = jnp.zeros((N_ROWS_H, H), f32)
    bh = bh.at[ROW_BP].set(p["bp"][0])
    for l in range(L):
        bh = bh.at[ROW_BATTN + l].set(b_attn[l])
        bh = bh.at[ROW_BB2 + l].set(p["bb2"][l, 0])
        bh = bh.at[ROW_G1 + l].set(p["g1"][l, 0])
        bh = bh.at[ROW_BE1 + l].set(p["be1"][l, 0])
        bh = bh.at[ROW_G2 + l].set(p["g2"][l, 0])
        bh = bh.at[ROW_BE2 + l].set(p["be2"][l, 0])
    bh = bh.at[ROW_BF2].set(p["bf2"][0])
    bh = bh.at[ROW_BHEAD].set(bhead)

    # Pack F-wide row parameters into one slab.
    bfs = jnp.zeros((N_ROWS_F, F), f32)
    for l in range(L):
        bfs = bfs.at[ROW_BB1 + l].set(p["bb1"][l, 0])
    bfs = bfs.at[ROW_BF1].set(p["bf1"][0])

    return {
        "wp": p["wp"].astype(bf16),
        "m": m.astype(bf16),
        "w1": p["w1"].astype(bf16),
        "w2": p["w2"].astype(bf16),
        "wf1": p["wf1"].astype(bf16),
        "wf2": p["wf2"].astype(bf16),
        "wh": wh.astype(bf16),
        "bh": bh,
        "bf": bfs,
    }


# TODO(synk): for tiny-batch serving the remaining fixed cost is the per-call
# weight DMA; cross-pallas_call weight residency (P10) would remove it.
@jax.jit
def financial_transformer_forward(x, packed):
    """x: (B, input_dim) float32  ->  (y_1d, y_30d), each (B,) float32."""
    B, D_in = x.shape
    H = packed["wh"].shape[0]

    # Batch tiling: 256-row tiles fill the v6e/v7x MXU; small batches are
    # rounded up to 16 rows (full bf16 [16,128] vregs) and run as one tile.
    tile_b = 256 if B >= 256 else _round_up(B, 16)
    pad_b = _round_up(B, tile_b)
    grid = (pad_b // tile_b,)

    # Pre-cast x to bf16 (halves the activation DMA bytes) and pad the batch.
    x_b = x.astype(jnp.bfloat16)
    if pad_b != B:
        x_b = jnp.pad(x_b, ((0, pad_b - B), (0, 0)))

    weights = tuple(packed[k] for k in _PACKED_ORDER)
    args = (x_b,) + weights

    in_specs = [pl.BlockSpec((tile_b, D_in), lambda i: (i, 0))]
    in_specs += [_const_spec(w.shape) for w in weights]
    out_specs = pl.BlockSpec((tile_b, H), lambda i: (i, 0))
    out_shape = jax.ShapeDtypeStruct((pad_b, H), jnp.float32)

    y = pl.pallas_call(
        financial_transformer_kernel,
        grid=grid,
        in_specs=in_specs,
        out_specs=out_specs,
        out_shape=out_shape,
        compiler_params=pltpu.CompilerParams(
            dimension_semantics=("parallel",),
        ),
    )(*args)
    return y[:B, 0], y[:B, 1]


def init_params(key, input_dim, hidden_dim):
    """Deterministic synthetic parameters matching the module's shapes."""
    H, F = hidden_dim, hidden_dim * 4
    L = NUM_LAYERS
    scale = 0.05
    ks = iter(jax.random.split(key, 32))

    def w(shape):
        return jax.random.normal(next(ks), shape, jnp.float32) * scale

    return {
        # input_projection
        "wp": w((input_dim, H)), "bp": w((1, H)),
        # per-layer attention V / out_proj (stacked over layers)
        "wv": w((L, H, H)), "bv": w((L, 1, H)),
        "wo": w((L, H, H)), "bo": w((L, 1, H)),
        # per-layer norm1
        "g1": jnp.ones((L, 1, H), jnp.float32), "be1": jnp.zeros((L, 1, H), jnp.float32),
        # per-layer encoder FFN
        "w1": w((L, H, F)), "bb1": w((L, 1, F)),
        "w2": w((L, F, H)), "bb2": w((L, 1, H)),
        # per-layer norm2
        "g2": jnp.ones((L, 1, H), jnp.float32), "be2": jnp.zeros((L, 1, H), jnp.float32),
        # residual self.ffn (GELU branch)
        "wf1": w((H, F)), "bf1": w((1, F)),
        "wf2": w((F, H)), "bf2": w((1, H)),
        # output heads
        "wo1": w((H, 1)), "bo1": w((1, 1)),
        "wo30": w((H, 1)), "bo30": w((1, 1)),
    }


def reference_forward(x, p):
    """Pure-JAX f32 reference with the original (unfolded) math."""
    h = x @ p["wp"] + p["bp"]
    for l in range(NUM_LAYERS):
        v = h @ p["wv"][l] + p["bv"][l]
        attn = v @ p["wo"][l] + p["bo"][l]
        h = _layernorm(h + attn, p["g1"][l], p["be1"][l])
        ff = jnp.maximum(h @ p["w1"][l] + p["bb1"][l], 0.0) @ p["w2"][l] + p["bb2"][l]
        h = _layernorm(h + ff, p["g2"][l], p["be2"][l])
    t = _gelu_exact(h @ p["wf1"] + p["bf1"]) @ p["wf2"] + p["bf2"]
    h = h + t
    return (h @ p["wo1"] + p["bo1"])[:, 0], (h @ p["wo30"] + p["bo30"])[:, 0]


if __name__ == "__main__":
    BATCH = 8
    INPUT_DIM = 64
    HIDDEN_DIM = 128  # module default

    key = jax.random.PRNGKey(0)
    kx, kp = jax.random.split(key)
    x = jax.random.normal(kx, (BATCH, INPUT_DIM), jnp.float32)
    params = init_params(kp, INPUT_DIM, HIDDEN_DIM)
    packed = pack_params(params)

    y_1d, y_30d = financial_transformer_forward(x, packed)
    jax.block_until_ready((y_1d, y_30d))

    # sanity check against the pure-JAX f32 reference (bf16 matmul operands ->
    # slightly looser tolerance than an all-f32 version)
    r_1d, r_30d = reference_forward(x, params)
    assert y_1d.shape == (BATCH,) and y_30d.shape == (BATCH,)
    assert jnp.allclose(y_1d, r_1d, rtol=3e-2, atol=3e-2)
    assert jnp.allclose(y_30d, r_30d, rtol=3e-2, atol=3e-2)

    print("KERNEL_OK")
</pallas_src>

<mosaic_0001>
module attributes {stable_mosaic.version = 11 : i64} {
  func.func @financial_transformer_kernel(%arg0: i32, %arg1: memref<16x64xbf16, #tpu.memory_space<vmem>>, %arg2: memref<64x128xbf16, #tpu.memory_space<vmem>>, %arg3: memref<2x128x128xbf16, #tpu.memory_space<vmem>>, %arg4: memref<2x128x512xbf16, #tpu.memory_space<vmem>>, %arg5: memref<2x512x128xbf16, #tpu.memory_space<vmem>>, %arg6: memref<128x512xbf16, #tpu.memory_space<vmem>>, %arg7: memref<512x128xbf16, #tpu.memory_space<vmem>>, %arg8: memref<128x128xbf16, #tpu.memory_space<vmem>>, %arg9: memref<16x128xf32, #tpu.memory_space<vmem>>, %arg10: memref<8x512xf32, #tpu.memory_space<vmem>>, %arg11: memref<16x128xf32, #tpu.memory_space<vmem>>) attributes {dimension_semantics = [#tpu.dimension_semantics<parallel>], iteration_bounds = array<i64: 1>, scalar_prefetch = 0 : i64, scratch_operands = 0 : i64, tpu.core_type = #tpu.core_type<tc>, window_params = [{transform_indices = @transform_0, window_bounds = array<i64: 16, 64>}, {pipeline_mode = #tpu.pipeline_mode<synchronous>, transform_indices = @transform_1, window_bounds = array<i64: 64, 128>}, {pipeline_mode = #tpu.pipeline_mode<synchronous>, transform_indices = @transform_2, window_bounds = array<i64: 2, 128, 128>}, {pipeline_mode = #tpu.pipeline_mode<synchronous>, transform_indices = @transform_3, window_bounds = array<i64: 2, 128, 512>}, {pipeline_mode = #tpu.pipeline_mode<synchronous>, transform_indices = @transform_4, window_bounds = array<i64: 2, 512, 128>}, {pipeline_mode = #tpu.pipeline_mode<synchronous>, transform_indices = @transform_5, window_bounds = array<i64: 128, 512>}, {pipeline_mode = #tpu.pipeline_mode<synchronous>, transform_indices = @transform_6, window_bounds = array<i64: 512, 128>}, {pipeline_mode = #tpu.pipeline_mode<synchronous>, transform_indices = @transform_7, window_bounds = array<i64: 128, 128>}, {pipeline_mode = #tpu.pipeline_mode<synchronous>, transform_indices = @transform_8, window_bounds = array<i64: 16, 128>}, {pipeline_mode = #tpu.pipeline_mode<synchronous>, transform_indices = @transform_9, window_bounds = array<i64: 8, 512>}, {transform_indices = @transform_10, window_bounds = array<i64: 16, 128>}]} {
    %c0 = arith.constant 0 : index
    %c0_0 = arith.constant 0 : index
    %0 = vector.load %arg9[%c0, %c0_0] : memref<16x128xf32, #tpu.memory_space<vmem>>, vector<16x128xf32>
    %c0_1 = arith.constant 0 : index
    %c0_2 = arith.constant 0 : index
    %1 = vector.load %arg10[%c0_1, %c0_2] : memref<8x512xf32, #tpu.memory_space<vmem>>, vector<8x512xf32>
    %c0_3 = arith.constant 0 : index
    %c0_4 = arith.constant 0 : index
    %2 = vector.load %arg1[%c0_3, %c0_4] : memref<16x64xbf16, #tpu.memory_space<vmem>>, vector<16x64xbf16>
    %c0_5 = arith.constant 0 : index
    %c0_6 = arith.constant 0 : index
    %3 = vector.load %arg2[%c0_5, %c0_6] : memref<64x128xbf16, #tpu.memory_space<vmem>>, vector<64x128xbf16>
    %cst = arith.constant dense<0.000000e+00> : vector<16x128xf32>
    %4 = tpu.matmul %2, %3, %cst {dimension_numbers = #tpu.dot_dimension_numbers<[1], [0], [0], [1], [0, 0, 1, 1], [], []>} : vector<16x64xbf16>, vector<64x128xbf16>, vector<16x128xf32> -> vector<16x128xf32>
    %5 = vector.extract_strided_slice %0 {offsets = [0, 0], sizes = [1, 128], strides = [1, 1]} : vector<16x128xf32> to vector<1x128xf32>
    %6 = vector.broadcast %5 : vector<1x128xf32> to vector<16x128xf32>
    %7 = arith.addf %4, %6 : vector<16x128xf32>
    %8 = arith.truncf %7 : vector<16x128xf32> to vector<16x128xbf16>
    %c0_7 = arith.constant 0 : index
    %c0_8 = arith.constant 0 : index
    %c0_9 = arith.constant 0 : index
    %9 = vector.load %arg3[%c0_7, %c0_8, %c0_9] : memref<2x128x128xbf16, #tpu.memory_space<vmem>>, vector<1x128x128xbf16>
    %10 = vector.shape_cast %9 : vector<1x128x128xbf16> to vector<128x128xbf16>
    %cst_10 = arith.constant dense<0.000000e+00> : vector<16x128xf32>
    %11 = tpu.matmul %8, %10, %cst_10 {dimension_numbers = #tpu.dot_dimension_numbers<[1], [0], [0], [1], [0, 0, 1, 1], [], []>} : vector<16x128xbf16>, vector<128x128xbf16>, vector<16x128xf32> -> vector<16x128xf32>
    %12 = arith.addf %7, %11 : vector<16x128xf32>
    %13 = vector.extract_strided_slice %0 {offsets = [1, 0], sizes = [1, 128], strides = [1, 1]} : vector<16x128xf32> to vector<1x128xf32>
    %14 = vector.broadcast %13 : vector<1x128xf32> to vector<16x128xf32>
    %15 = arith.addf %12, %14 : vector<16x128xf32>
    %16 = vector.extract_strided_slice %0 {offsets = [5, 0], sizes = [1, 128], strides = [1, 1]} : vector<16x128xf32> to vector<1x128xf32>
    %17 = vector.extract_strided_slice %0 {offsets = [7, 0], sizes = [1, 128], strides = [1, 1]} : vector<16x128xf32> to vector<1x128xf32>
    %cst_11 = arith.constant dense<0.000000e+00> : vector<16xf32>
    %18 = vector.multi_reduction <add>, %15, %cst_11 [1] : vector<16x128xf32> to vector<16xf32>
    %19 = vector.shape_cast %18 : vector<16xf32> to vector<16x1xf32>
    %cst_12 = arith.constant 1.280000e+02 : f32
    %20 = vector.broadcast %cst_12 : f32 to vector<16x1xf32>
    %21 = arith.divf %19, %20 : vector<16x1xf32>
    %22 = vector.broadcast %21 : vector<16x1xf32> to vector<16x128xf32>
    %23 = arith.subf %15, %22 : vector<16x128xf32>
    %24 = arith.mulf %23, %23 : vector<16x128xf32>
    %cst_13 = arith.constant dense<0.000000e+00> : vector<16xf32>
    %25 = vector.multi_reduction <add>, %24, %cst_13 [1] : vector<16x128xf32> to vector<16xf32>
    %26 = vector.shape_cast %25 : vector<16xf32> to vector<16x1xf32>
    %cst_14 = arith.constant 1.280000e+02 : f32
    %27 = vector.broadcast %cst_14 : f32 to vector<16x1xf32>
    %28 = arith.divf %26, %27 : vector<16x1xf32>
    %29 = vector.broadcast %21 : vector<16x1xf32> to vector<16x128xf32>
    %30 = arith.subf %15, %29 : vector<16x128xf32>
    %cst_15 = arith.constant 9.99999974E-6 : f32
    %31 = vector.broadcast %cst_15 : f32 to vector<16x1xf32>
    %32 = arith.addf %28, %31 : vector<16x1xf32>
    %33 = math.rsqrt %32 : vector<16x1xf32>
    %34 = vector.broadcast %33 : vector<16x1xf32> to vector<16x128xf32>
    %35 = arith.mulf %30, %34 : vector<16x128xf32>
    %36 = vector.broadcast %16 : vector<1x128xf32> to vector<16x128xf32>
    %37 = arith.mulf %35, %36 : vector<16x128xf32>
    %38 = vector.broadcast %17 : vector<1x128xf32> to vector<16x128xf32>
    %39 = arith.addf %37, %38 : vector<16x128xf32>
    %40 = arith.truncf %39 : vector<16x128xf32> to vector<16x128xbf16>
    %c0_16 = arith.constant 0 : index
    %c0_17 = arith.constant 0 : index
    %c0_18 = arith.constant 0 : index
    %41 = vector.load %arg4[%c0_16, %c0_17, %c0_18] : memref<2x128x512xbf16, #tpu.memory_space<vmem>>, vector<1x128x512xbf16>
    %42 = vector.shape_cast %41 : vector<1x128x512xbf16> to vector<128x512xbf16>
    %cst_19 = arith.constant dense<0.000000e+00> : vector<16x512xf32>
    %43 = tpu.matmul %40, %42, %cst_19 {dimension_numbers = #tpu.dot_dimension_numbers<[1], [0], [0], [1], [0, 0, 1, 1], [], []>} : vector<16x128xbf16>, vector<128x512xbf16>, vector<16x512xf32> -> vector<16x512xf32>
    %44 = vector.extract_strided_slice %1 {offsets = [0, 0], sizes = [1, 512], strides = [1, 1]} : vector<8x512xf32> to vector<1x512xf32>
    %45 = vector.broadcast %44 : vector<1x512xf32> to vector<16x512xf32>
    %46 = arith.addf %43, %45 : vector<16x512xf32>
    %cst_20 = arith.constant 0.000000e+00 : f32
    %47 = vector.broadcast %cst_20 : f32 to vector<16x512xf32>
    %48 = arith.maximumf %46, %47 : vector<16x512xf32>
    %49 = arith.truncf %48 : vector<16x512xf32> to vector<16x512xbf16>
    %c0_21 = arith.constant 0 : index
    %c0_22 = arith.constant 0 : index
    %c0_23 = arith.constant 0 : index
    %50 = vector.load %arg5[%c0_21, %c0_22, %c0_23] : memref<2x512x128xbf16, #tpu.memory_space<vmem>>, vector<1x512x128xbf16>
    %51 = vector.shape_cast %50 : vector<1x512x128xbf16> to vector<512x128xbf16>
    %cst_24 = arith.constant dense<0.000000e+00> : vector<16x128xf32>
    %52 = tpu.matmul %49, %51, %cst_24 {dimension_numbers = #tpu.dot_dimension_numbers<[1], [0], [0], [1], [0, 0, 1, 1], [], []>} : vector<16x512xbf16>, vector<512x128xbf16>, vector<16x128xf32> -> vector<16x128xf32>
    %53 = vector.extract_strided_slice %0 {offsets = [3, 0], sizes = [1, 128], strides = [1, 1]} : vector<16x128xf32> to vector<1x128xf32>
    %54 = vector.broadcast %53 : vector<1x128xf32> to vector<16x128xf32>
    %55 = arith.addf %52, %54 : vector<16x128xf32>
    %56 = arith.addf %39, %55 : vector<16x128xf32>
    %57 = vector.extract_strided_slice %0 {offsets = [9, 0], sizes = [1, 128], strides = [1, 1]} : vector<16x128xf32> to vector<1x128xf32>
    %58 = vector.extract_strided_slice %0 {offsets = [11, 0], sizes = [1, 128], strides = [1, 1]} : vector<16x128xf32> to vector<1x128xf32>
    %cst_25 = arith.constant dense<0.000000e+00> : vector<16xf32>
    %59 = vector.multi_reduction <add>, %56, %cst_25 [1] : vector<16x128xf32> to vector<16xf32>
    %60 = vector.shape_cast %59 : vector<16xf32> to vector<16x1xf32>
    %cst_26 = arith.constant 1.280000e+02 : f32
    %61 = vector.broadcast %cst_26 : f32 to vector<16x1xf32>
    %62 = arith.divf %60, %61 : vector<16x1xf32>
    %63 = vector.broadcast %62 : vector<16x1xf32> to vector<16x128xf32>
    %64 = arith.subf %56, %63 : vector<16x128xf32>
    %65 = arith.mulf %64, %64 : vector<16x128xf32>
    %cst_27 = arith.constant dense<0.000000e+00> : vector<16xf32>
    %66 = vector.multi_reduction <add>, %65, %cst_27 [1] : vector<16x128xf32> to vector<16xf32>
    %67 = vector.shape_cast %66 : vector<16xf32> to vector<16x1xf32>
    %cst_28 = arith.constant 1.280000e+02 : f32
    %68 = vector.broadcast %cst_28 : f32 to vector<16x1xf32>
    %69 = arith.divf %67, %68 : vector<16x1xf32>
    %70 = vector.broadcast %62 : vector<16x1xf32> to vector<16x128xf32>
    %71 = arith.subf %56, %70 : vector<16x128xf32>
    %cst_29 = arith.constant 9.99999974E-6 : f32
    %72 = vector.broadcast %cst_29 : f32 to vector<16x1xf32>
    %73 = arith.addf %69, %72 : vector<16x1xf32>
    %74 = math.rsqrt %73 : vector<16x1xf32>
    %75 = vector.broadcast %74 : vector<16x1xf32> to vector<16x128xf32>
    %76 = arith.mulf %71, %75 : vector<16x128xf32>
    %77 = vector.broadcast %57 : vector<1x128xf32> to vector<16x128xf32>
    %78 = arith.mulf %76, %77 : vector<16x128xf32>
    %79 = vector.broadcast %58 : vector<1x128xf32> to vector<16x128xf32>
    %80 = arith.addf %78, %79 : vector<16x128xf32>
    %81 = arith.truncf %80 : vector<16x128xf32> to vector<16x128xbf16>
    %c1 = arith.constant 1 : index
    %c0_30 = arith.constant 0 : index
    %c0_31 = arith.constant 0 : index
    %82 = vector.load %arg3[%c1, %c0_30, %c0_31] : memref<2x128x128xbf16, #tpu.memory_space<vmem>>, vector<1x128x128xbf16>
    %83 = vector.shape_cast %82 : vector<1x128x128xbf16> to vector<128x128xbf16>
    %cst_32 = arith.constant dense<0.000000e+00> : vector<16x128xf32>
    %84 = tpu.matmul %81, %83, %cst_32 {dimension_numbers = #tpu.dot_dimension_numbers<[1], [0], [0], [1], [0, 0, 1, 1], [], []>} : vector<16x128xbf16>, vector<128x128xbf16>, vector<16x128xf32> -> vector<16x128xf32>
    %85 = arith.addf %80, %84 : vector<16x128xf32>
    %86 = vector.extract_strided_slice %0 {offsets = [2, 0], sizes = [1, 128], strides = [1, 1]} : vector<16x128xf32> to vector<1x128xf32>
    %87 = vector.broadcast %86 : vector<1x128xf32> to vector<16x128xf32>
    %88 = arith.addf %85, %87 : vector<16x128xf32>
    %89 = vector.extract_strided_slice %0 {offsets = [6, 0], sizes = [1, 128], strides = [1, 1]} : vector<16x128xf32> to vector<1x128xf32>
    %90 = vector.extract_strided_slice %0 {offsets = [8, 0], sizes = [1, 128], strides = [1, 1]} : vector<16x128xf32> to vector<1x128xf32>
    %cst_33 = arith.constant dense<0.000000e+00> : vector<16xf32>
    %91 = vector.multi_reduction <add>, %88, %cst_33 [1] : vector<16x128xf32> to vector<16xf32>
    %92 = vector.shape_cast %91 : vector<16xf32> to vector<16x1xf32>
    %cst_34 = arith.constant 1.280000e+02 : f32
    %93 = vector.broadcast %cst_34 : f32 to vector<16x1xf32>
    %94 = arith.divf %92, %93 : vector<16x1xf32>
    %95 = vector.broadcast %94 : vector<16x1xf32> to vector<16x128xf32>
    %96 = arith.subf %88, %95 : vector<16x128xf32>
    %97 = arith.mulf %96, %96 : vector<16x128xf32>
    %cst_35 = arith.constant dense<0.000000e+00> : vector<16xf32>
    %98 = vector.multi_reduction <add>, %97, %cst_35 [1] : vector<16x128xf32> to vector<16xf32>
    %99 = vector.shape_cast %98 : vector<16xf32> to vector<16x1xf32>
    %cst_36 = arith.constant 1.280000e+02 : f32
    %100 = vector.broadcast %cst_36 : f32 to vector<16x1xf32>
    %101 = arith.divf %99, %100 : vector<16x1xf32>
    %102 = vector.broadcast %94 : vector<16x1xf32> to vector<16x128xf32>
    %103 = arith.subf %88, %102 : vector<16x128xf32>
    %cst_37 = arith.constant 9.99999974E-6 : f32
    %104 = vector.broadcast %cst_37 : f32 to vector<16x1xf32>
    %105 = arith.addf %101, %104 : vector<16x1xf32>
    %106 = math.rsqrt %105 : vector<16x1xf32>
    %107 = vector.broadcast %106 : vector<16x1xf32> to vector<16x128xf32>
    %108 = arith.mulf %103, %107 : vector<16x128xf32>
    %109 = vector.broadcast %89 : vector<1x128xf32> to vector<16x128xf32>
    %110 = arith.mulf %108, %109 : vector<16x128xf32>
    %111 = vector.broadcast %90 : vector<1x128xf32> to vector<16x128xf32>
    %112 = arith.addf %110, %111 : vector<16x128xf32>
    %113 = arith.truncf %112 : vector<16x128xf32> to vector<16x128xbf16>
    %c1_38 = arith.constant 1 : index
    %c0_39 = arith.constant 0 : index
    %c0_40 = arith.constant 0 : index
    %114 = vector.load %arg4[%c1_38, %c0_39, %c0_40] : memref<2x128x512xbf16, #tpu.memory_space<vmem>>, vector<1x128x512xbf16>
    %115 = vector.shape_cast %114 : vector<1x128x512xbf16> to vector<128x512xbf16>
    %cst_41 = arith.constant dense<0.000000e+00> : vector<16x512xf32>
    %116 = tpu.matmul %113, %115, %cst_41 {dimension_numbers = #tpu.dot_dimension_numbers<[1], [0], [0], [1], [0, 0, 1, 1], [], []>} : vector<16x128xbf16>, vector<128x512xbf16>, vector<16x512xf32> -> vector<16x512xf32>
    %117 = vector.extract_strided_slice %1 {offsets = [1, 0], sizes = [1, 512], strides = [1, 1]} : vector<8x512xf32> to vector<1x512xf32>
    %118 = vector.broadcast %117 : vector<1x512xf32> to vector<16x512xf32>
    %119 = arith.addf %116, %118 : vector<16x512xf32>
    %cst_42 = arith.constant 0.000000e+00 : f32
    %120 = vector.broadcast %cst_42 : f32 to vector<16x512xf32>
    %121 = arith.maximumf %119, %120 : vector<16x512xf32>
    %122 = arith.truncf %121 : vector<16x512xf32> to vector<16x512xbf16>
    %c1_43 = arith.constant 1 : index
    %c0_44 = arith.constant 0 : index
    %c0_45 = arith.constant 0 : index
    %123 = vector.load %arg5[%c1_43, %c0_44, %c0_45] : memref<2x512x128xbf16, #tpu.memory_space<vmem>>, vector<1x512x128xbf16>
    %124 = vector.shape_cast %123 : vector<1x512x128xbf16> to vector<512x128xbf16>
    %cst_46 = arith.constant dense<0.000000e+00> : vector<16x128xf32>
    %125 = tpu.matmul %122, %124, %cst_46 {dimension_numbers = #tpu.dot_dimension_numbers<[1], [0], [0], [1], [0, 0, 1, 1], [], []>} : vector<16x512xbf16>, vector<512x128xbf16>, vector<16x128xf32> -> vector<16x128xf32>
    %126 = vector.extract_strided_slice %0 {offsets = [4, 0], sizes = [1, 128], strides = [1, 1]} : vector<16x128xf32> to vector<1x128xf32>
    %127 = vector.broadcast %126 : vector<1x128xf32> to vector<16x128xf32>
    %128 = arith.addf %125, %127 : vector<16x128xf32>
    %129 = arith.addf %112, %128 : vector<16x128xf32>
    %130 = vector.extract_strided_slice %0 {offsets = [10, 0], sizes = [1, 128], strides = [1, 1]} : vector<16x128xf32> to vector<1x128xf32>
    %131 = vector.extract_strided_slice %0 {offsets = [12, 0], sizes = [1, 128], strides = [1, 1]} : vector<16x128xf32> to vector<1x128xf32>
    %cst_47 = arith.constant dense<0.000000e+00> : vector<16xf32>
    %132 = vector.multi_reduction <add>, %129, %cst_47 [1] : vector<16x128xf32> to vector<16xf32>
    %133 = vector.shape_cast %132 : vector<16xf32> to vector<16x1xf32>
    %cst_48 = arith.constant 1.280000e+02 : f32
    %134 = vector.broadcast %cst_48 : f32 to vector<16x1xf32>
    %135 = arith.divf %133, %134 : vector<16x1xf32>
    %136 = vector.broadcast %135 : vector<16x1xf32> to vector<16x128xf32>
    %137 = arith.subf %129, %136 : vector<16x128xf32>
    %138 = arith.mulf %137, %137 : vector<16x128xf32>
    %cst_49 = arith.constant dense<0.000000e+00> : vector<16xf32>
    %139 = vector.multi_reduction <add>, %138, %cst_49 [1] : vector<16x128xf32> to vector<16xf32>
    %140 = vector.shape_cast %139 : vector<16xf32> to vector<16x1xf32>
    %cst_50 = arith.constant 1.280000e+02 : f32
    %141 = vector.broadcast %cst_50 : f32 to vector<16x1xf32>
    %142 = arith.divf %140, %141 : vector<16x1xf32>
    %143 = vector.broadcast %135 : vector<16x1xf32> to vector<16x128xf32>
    %144 = arith.subf %129, %143 : vector<16x128xf32>
    %cst_51 = arith.constant 9.99999974E-6 : f32
    %145 = vector.broadcast %cst_51 : f32 to vector<16x1xf32>
    %146 = arith.addf %142, %145 : vector<16x1xf32>
    %147 = math.rsqrt %146 : vector<16x1xf32>
    %148 = vector.broadcast %147 : vector<16x1xf32> to vector<16x128xf32>
    %149 = arith.mulf %144, %148 : vector<16x128xf32>
    %150 = vector.broadcast %130 : vector<1x128xf32> to vector<16x128xf32>
    %151 = arith.mulf %149, %150 : vector<16x128xf32>
    %152 = vector.broadcast %131 : vector<1x128xf32> to vector<16x128xf32>
    %153 = arith.addf %151, %152 : vector<16x128xf32>
    %154 = arith.truncf %153 : vector<16x128xf32> to vector<16x128xbf16>
    %c0_52 = arith.constant 0 : index
    %c0_53 = arith.constant 0 : index
    %155 = vector.load %arg6[%c0_52, %c0_53] : memref<128x512xbf16, #tpu.memory_space<vmem>>, vector<128x512xbf16>
    %cst_54 = arith.constant dense<0.000000e+00> : vector<16x512xf32>
    %156 = tpu.matmul %154, %155, %cst_54 {dimension_numbers = #tpu.dot_dimension_numbers<[1], [0], [0], [1], [0, 0, 1, 1], [], []>} : vector<16x128xbf16>, vector<128x512xbf16>, vector<16x512xf32> -> vector<16x512xf32>
    %157 = vector.extract_strided_slice %1 {offsets = [2, 0], sizes = [1, 512], strides = [1, 1]} : vector<8x512xf32> to vector<1x512xf32>
    %158 = vector.broadcast %157 : vector<1x512xf32> to vector<16x512xf32>
    %159 = arith.addf %156, %158 : vector<16x512xf32>
    %cst_55 = arith.constant 5.000000e-01 : f32
    %160 = vector.broadcast %cst_55 : f32 to vector<16x512xf32>
    %161 = arith.mulf %160, %159 : vector<16x512xf32>
    %cst_56 = arith.constant 0.707106769 : f32
    %162 = vector.broadcast %cst_56 : f32 to vector<16x512xf32>
    %163 = arith.mulf %159, %162 : vector<16x512xf32>
    %164 = math.erf %163 : vector<16x512xf32>
    %cst_57 = arith.constant 1.000000e+00 : f32
    %165 = vector.broadcast %cst_57 : f32 to vector<16x512xf32>
    %166 = arith.addf %165, %164 : vector<16x512xf32>
    %167 = arith.mulf %161, %166 : vector<16x512xf32>
    %168 = arith.truncf %167 : vector<16x512xf32> to vector<16x512xbf16>
    %c0_58 = arith.constant 0 : index
    %c0_59 = arith.constant 0 : index
    %169 = vector.load %arg7[%c0_58, %c0_59] : memref<512x128xbf16, #tpu.memory_space<vmem>>, vector<512x128xbf16>
    %cst_60 = arith.constant dense<0.000000e+00> : vector<16x128xf32>
    %170 = tpu.matmul %168, %169, %cst_60 {dimension_numbers = #tpu.dot_dimension_numbers<[1], [0], [0], [1], [0, 0, 1, 1], [], []>} : vector<16x512xbf16>, vector<512x128xbf16>, vector<16x128xf32> -> vector<16x128xf32>
    %171 = vector.extract_strided_slice %0 {offsets = [13, 0], sizes = [1, 128], strides = [1, 1]} : vector<16x128xf32> to vector<1x128xf32>
    %172 = vector.broadcast %171 : vector<1x128xf32> to vector<16x128xf32>
    %173 = arith.addf %170, %172 : vector<16x128xf32>
    %174 = arith.addf %153, %173 : vector<16x128xf32>
    %175 = arith.truncf %174 : vector<16x128xf32> to vector<16x128xbf16>
    %c0_61 = arith.constant 0 : index
    %c0_62 = arith.constant 0 : index
    %176 = vector.load %arg8[%c0_61, %c0_62] : memref<128x128xbf16, #tpu.memory_space<vmem>>, vector<128x128xbf16>
    %cst_63 = arith.constant dense<0.000000e+00> : vector<16x128xf32>
    %177 = tpu.matmul %175, %176, %cst_63 {dimension_numbers = #tpu.dot_dimension_numbers<[1], [0], [0], [1], [0, 0, 1, 1], [], []>} : vector<16x128xbf16>, vector<128x128xbf16>, vector<16x128xf32> -> vector<16x128xf32>
    %178 = vector.extract_strided_slice %0 {offsets = [14, 0], sizes = [1, 128], strides = [1, 1]} : vector<16x128xf32> to vector<1x128xf32>
    %179 = vector.broadcast %178 : vector<1x128xf32> to vector<16x128xf32>
    %180 = arith.addf %177, %179 : vector<16x128xf32>
    %c0_64 = arith.constant 0 : index
    %c0_65 = arith.constant 0 : index
    %181 = vector.load %arg11[%c0_64, %c0_65] : memref<16x128xf32, #tpu.memory_space<vmem>>, vector<16x128xf32>
    tpu.vector_store %arg11[%c0_64, %c0_65], %180 {strides = array<i32>} : memref<16x128xf32, #tpu.memory_space<vmem>>, vector<16x128xf32>,
    return
  }
  func.func @transform_0(%arg0: i32) -> (i32, i32) {
    %c0_i32 = arith.constant 0 : i32
    %c0_i32_0 = arith.constant 0 : i32
    return %arg0, %c0_i32 : i32, i32
  }
  func.func @transform_1(%arg0: i32) -> (i32, i32) {
    %c0_i32 = arith.constant 0 : i32
    %c0_i32_0 = arith.constant 0 : i32
    %c0_i32_1 = arith.constant 0 : i32
    return %c0_i32, %c0_i32_0 : i32, i32
  }
  func.func @transform_2(%arg0: i32) -> (i32, i32, i32) {
    %c0_i32 = arith.constant 0 : i32
    %c0_i32_0 = arith.constant 0 : i32
    %c0_i32_1 = arith.constant 0 : i32
    %c0_i32_2 = arith.constant 0 : i32
    return %c0_i32, %c0_i32_0, %c0_i32_1 : i32, i32, i32
  }
  func.func @transform_3(%arg0: i32) -> (i32, i32, i32) {
    %c0_i32 = arith.constant 0 : i32
    %c0_i32_0 = arith.constant 0 : i32
    %c0_i32_1 = arith.constant 0 : i32
    %c0_i32_2 = arith.constant 0 : i32
    return %c0_i32, %c0_i32_0, %c0_i32_1 : i32, i32, i32
  }
  func.func @transform_4(%arg0: i32) -> (i32, i32, i32) {
    %c0_i32 = arith.constant 0 : i32
    %c0_i32_0 = arith.constant 0 : i32
    %c0_i32_1 = arith.constant 0 : i32
    %c0_i32_2 = arith.constant 0 : i32
    return %c0_i32, %c0_i32_0, %c0_i32_1 : i32, i32, i32
  }
  func.func @transform_5(%arg0: i32) -> (i32, i32) {
    %c0_i32 = arith.constant 0 : i32
    %c0_i32_0 = arith.constant 0 : i32
    %c0_i32_1 = arith.constant 0 : i32
    return %c0_i32, %c0_i32_0 : i32, i32
  }
  func.func @transform_6(%arg0: i32) -> (i32, i32) {
    %c0_i32 = arith.constant 0 : i32
    %c0_i32_0 = arith.constant 0 : i32
    %c0_i32_1 = arith.constant 0 : i32
    return %c0_i32, %c0_i32_0 : i32, i32
  }
  func.func @transform_7(%arg0: i32) -> (i32, i32) {
    %c0_i32 = arith.constant 0 : i32
    %c0_i32_0 = arith.constant 0 : i32
    %c0_i32_1 = arith.constant 0 : i32
    return %c0_i32, %c0_i32_0 : i32, i32
  }
  func.func @transform_8(%arg0: i32) -> (i32, i32) {
    %c0_i32 = arith.constant 0 : i32
    %c0_i32_0 = arith.constant 0 : i32
    %c0_i32_1 = arith.constant 0 : i32
    return %c0_i32, %c0_i32_0 : i32, i32
  }
  func.func @transform_9(%arg0: i32) -> (i32, i32) {
    %c0_i32 = arith.constant 0 : i32
    %c0_i32_0 = arith.constant 0 : i32
    %c0_i32_1 = arith.constant 0 : i32
    return %c0_i32, %c0_i32_0 : i32, i32
  }
  func.func @transform_10(%arg0: i32) -> (i32, i32) {
    %c0_i32 = arith.constant 0 : i32
    %c0_i32_0 = arith.constant 0 : i32
    return %arg0, %c0_i32 : i32, i32
  }
}

</mosaic_0001>

<llo_original>
// kernel: financial_transformer_forward.1
$region0: #{financial_transformer_forward.1}
  #allocation0 [shape = 'u32[]', space=smem, size = 0x4, offset = 0x4, fixed_abs, tag = 'smem constant byte address 0x4 - core index']
  #allocation1 [shape = 'u32[144,128]{1,0:T(1,128)}', space=vmem, size = 0x12000, scoped, tag = 'internal scratch']
  %s0 = inlined_call_operand.vmem [shape: bf16[16,64], index: 0, kind: input, shape index: {}]
  %s1 = inlined_call_operand.vmem [shape: bf16[64,128], index: 1, kind: input, shape index: {}]
  %s2 = inlined_call_operand.hbm [shape: bf16[2,128,128], index: 2, kind: input, shape index: {}]
  %s3 = inlined_call_operand.hbm [shape: bf16[2,128,512], index: 3, kind: input, shape index: {}]
  %s4 = inlined_call_operand.hbm [shape: bf16[2,512,128], index: 4, kind: input, shape index: {}]
  %s5 = inlined_call_operand.hbm [shape: bf16[128,512], index: 5, kind: input, shape index: {}]
  %s6 = inlined_call_operand.hbm [shape: bf16[512,128], index: 6, kind: input, shape index: {}]
  %s7 = inlined_call_operand.hbm [shape: bf16[128,128], index: 7, kind: input, shape index: {}]
  %s8 = inlined_call_operand.vmem [shape: f32[16,128], index: 8, kind: input, shape index: {}]
  %s9 = inlined_call_operand.hbm [shape: f32[8,512], index: 9, kind: input, shape index: {}]
  %s10 = inlined_call_operand.vmem [shape: f32[16,128], index: 10, kind: output, shape index: {}]
  %s11 = sld [smem:[#allocation0]]
  $region78: #{financial_transformer_forward.1} parent=0
    _
  %s13 = ssub.s32 1, %s11
  %s14 = scalar_select 0, %s13, %s11
  $region1: #{financial_transformer_forward.1} parent=0
    #allocation2 [shape = 'u8[65536]{0}', space=vmem, size = 0x10000, scoped, tag = 'input window, operand 2, single buffered']
    #allocation3 [shape = 's32[1]{0}', space=sflag, size = 0x4, scoped, tag = 'scoped memory for financial_transformer_forward.1']
    #allocation4 [shape = 'u8[262144]{0}', space=vmem, size = 0x40000, scoped, tag = 'input window, operand 3, single buffered']
    #allocation5 [shape = 's32[1]{0}', space=sflag, size = 0x4, scoped, tag = 'scoped memory for financial_transformer_forward.1']
    #allocation6 [shape = 'u8[262144]{0}', space=vmem, size = 0x40000, scoped, tag = 'input window, operand 4, single buffered']
    #allocation7 [shape = 'u8[131072]{0}', space=vmem, size = 0x20000, scoped, tag = 'input window, operand 5, single buffered']
    #allocation8 [shape = 's32[1]{0}', space=sflag, size = 0x4, scoped, tag = 'scoped memory for financial_transformer_forward.1']
    #allocation9 [shape = 'u8[131072]{0}', space=vmem, size = 0x20000, scoped, tag = 'input window, operand 6, single buffered']
    #allocation10 [shape = 'u8[32768]{0}', space=vmem, size = 0x8000, scoped, tag = 'input window, operand 7, single buffered']
    #allocation11 [shape = 's32[1]{0}', space=sflag, size = 0x4, scoped, tag = 'scoped memory for financial_transformer_forward.1']
    #allocation12 [shape = 'u8[16384]{0}', space=vmem, size = 0x4000, scoped, tag = 'input window, operand 9, single buffered']
    %15 = vsyncpa [#allocation3], 0
    %16 = vsyncpa [#allocation5], 0
    %17 = vsyncpa [#allocation8], 0
    %18 = vsyncpa [#allocation11], 0
    // Predicated region
    $region2: #{financial_transformer_forward.1} parent=1 // pred_check
      _
    $region3: #{financial_transformer_forward.1} parent=1 // pred_check_branch
      %20 = sbr.rel (0) target = $region5
    $region4: #{financial_transformer_forward.1} parent=1 // pred_region
      _
    $region5: #{financial_transformer_forward.1} parent=1 // pred_fallthru
      _
    // Predicated region
    $region6: #{financial_transformer_forward.1} parent=1 // pred_check
      _
    $region7: #{financial_transformer_forward.1} parent=1 // pred_check_branch
      %22 = sbr.rel (0) target = $region9
    $region8: #{financial_transformer_forward.1} parent=1 // pred_region
      _
    $region9: #{financial_transformer_forward.1} parent=1 // pred_fallthru
      _
    // Predicated region
    $region10: #{financial_transformer_forward.1} parent=1 // pred_check
      _
    $region11: #{financial_transformer_forward.1} parent=1 // pred_check_branch
      %24 = sbr.rel (0) target = $region13
    $region12: #{financial_transformer_forward.1} parent=1 // pred_region
      %s26 = ssub.s32 2048, 2048
      %27 = vsyncadd [#allocation3], %s26
      %s28 = sshll.u32 [#allocation2], 4
      %s29 = int_to_ptr.vmem [resolvable:$true] %s28
      %34 = dma.hbm_to_vmem [thread:$0]  %s2, 2048, %s29, [#allocation3], 64, 64, 4
    $region13: #{financial_transformer_forward.1} parent=1 // pred_fallthru
      _
    // Predicated region
    $region14: #{financial_transformer_forward.1} parent=1 // pred_check
      _
    $region15: #{financial_transformer_forward.1} parent=1 // pred_check_branch
      %36 = sbr.rel (0) target = $region17
    $region16: #{financial_transformer_forward.1} parent=1 // pred_region
      %s38 = ssub.s32 8192, 8192
      %39 = vsyncadd [#allocation5], %s38
      %s40 = sshll.u32 [#allocation4], 4
      %s41 = int_to_ptr.vmem [resolvable:$true] %s40
      %46 = dma.hbm_to_vmem [thread:$0]  %s3, 8192, %s41, [#allocation5], 256, 256, 16
    $region17: #{financial_transformer_forward.1} parent=1 // pred_fallthru
      _
    // Predicated region
    $region18: #{financial_transformer_forward.1} parent=1 // pred_check
      _
    $region19: #{financial_transformer_forward.1} parent=1 // pred_check_branch
      %48 = sbr.rel (0) target = $region21
    $region20: #{financial_transformer_forward.1} parent=1 // pred_region
      %s50 = ssub.s32 8192, 8192
      %51 = vsyncadd [#allocation5], %s50
      %s52 = sshll.u32 [#allocation6], 4
      %s53 = int_to_ptr.vmem [resolvable:$true] %s52
      %58 = dma.hbm_to_vmem [thread:$0]  %s4, 8192, %s53, [#allocation5], 64, 64, 4
    $region21: #{financial_transformer_forward.1} parent=1 // pred_fallthru
      _
    // Predicated region
    $region22: #{financial_transformer_forward.1} parent=1 // pred_check
      _
    $region23: #{financial_transformer_forward.1} parent=1 // pred_check_branch
      %60 = sbr.rel (0) target = $region25
    $region24: #{financial_transformer_forward.1} parent=1 // pred_region
      %s62 = ssub.s32 4096, 4096
      %63 = vsyncadd [#allocation8], %s62
      %s64 = sshll.u32 [#allocation7], 4
      %s65 = int_to_ptr.vmem [resolvable:$true] %s64
      %70 = dma.hbm_to_vmem [thread:$0]  %s5, 4096, %s65, [#allocation8], 256, 256, 16
    $region25: #{financial_transformer_forward.1} parent=1 // pred_fallthru
      _
    // Predicated region
    $region26: #{financial_transformer_forward.1} parent=1 // pred_check
      _
    $region27: #{financial_transformer_forward.1} parent=1 // pred_check_branch
      %72 = sbr.rel (0) target = $region29
    $region28: #{financial_transformer_forward.1} parent=1 // pred_region
      %s74 = ssub.s32 4096, 4096
      %75 = vsyncadd [#allocation8], %s74
      %s76 = sshll.u32 [#allocation9], 4
      %s77 = int_to_ptr.vmem [resolvable:$true] %s76
      %82 = dma.hbm_to_vmem [thread:$0]  %s6, 4096, %s77, [#allocation8], 64, 64, 4
    $region29: #{financial_transformer_forward.1} parent=1 // pred_fallthru
      _
    // Predicated region
    $region30: #{financial_transformer_forward.1} parent=1 // pred_check
      _
    $region31: #{financial_transformer_forward.1} parent=1 // pred_check_branch
      %84 = sbr.rel (0) target = $region33
    $region32: #{financial_transformer_forward.1} parent=1 // pred_region
      %s86 = ssub.s32 1024, 1024
      %87 = vsyncadd [#allocation11], %s86
      %s88 = sshll.u32 [#allocation10], 4
      %s89 = int_to_ptr.vmem [resolvable:$true] %s88
      %94 = dma.hbm_to_vmem [thread:$0]  %s7, 1024, %s89, [#allocation11], 64, 64, 4
    $region33: #{financial_transformer_forward.1} parent=1 // pred_fallthru
      _
    // Predicated region
    $region34: #{financial_transformer_forward.1} parent=1 // pred_check
      _
    $region35: #{financial_transformer_forward.1} parent=1 // pred_check_branch
      %96 = sbr.rel (0) target = $region37
    $region36: #{financial_transformer_forward.1} parent=1 // pred_region
      _
    $region37: #{financial_transformer_forward.1} parent=1 // pred_fallthru
      _
    // Predicated region
    $region38: #{financial_transformer_forward.1} parent=1 // pred_check
      _
    $region39: #{financial_transformer_forward.1} parent=1 // pred_check_branch
      %98 = sbr.rel (0) target = $region41
    $region40: #{financial_transformer_forward.1} parent=1 // pred_region
      %s100 = ssub.s32 512, 512
      %101 = vsyncadd [#allocation11], %s100
      %s103 = sshll.u32 [#allocation12], 4
      %s104 = int_to_ptr.vmem [resolvable:$true] %s103
      %106 = dma.hbm_to_vmem [thread:$0]  %s9, 512, %s104, [#allocation11]
    $region41: #{financial_transformer_forward.1} parent=1 // pred_fallthru
      _
    // Predicated region
    $region42: #{financial_transformer_forward.1} parent=1 // pred_check
      _
    $region43: #{financial_transformer_forward.1} parent=1 // pred_check_branch
      %108 = sbr.rel (0) target = $region45
    $region44: #{financial_transformer_forward.1} parent=1 // pred_region
      %109 = dma.done [#allocation3], 2048
    $region45: #{financial_transformer_forward.1} parent=1 // pred_fallthru
      _
    // Predicated region
    $region46: #{financial_transformer_forward.1} parent=1 // pred_check
      _
    $region47: #{financial_transformer_forward.1} parent=1 // pred_check_branch
      %111 = sbr.rel (0) target = $region49
    $region48: #{financial_transformer_forward.1} parent=1 // pred_region
      %112 = dma.done [#allocation5], 8192
    $region49: #{financial_transformer_forward.1} parent=1 // pred_fallthru
      _
    // Predicated region
    $region50: #{financial_transformer_forward.1} parent=1 // pred_check
      _
    $region51: #{financial_transformer_forward.1} parent=1 // pred_check_branch
      %114 = sbr.rel (0) target = $region53
    $region52: #{financial_transformer_forward.1} parent=1 // pred_region
      %115 = dma.done [#allocation5], 8192
    $region53: #{financial_transformer_forward.1} parent=1 // pred_fallthru
      _
    // Predicated region
    $region54: #{financial_transformer_forward.1} parent=1 // pred_check
      _
    $region55: #{financial_transformer_forward.1} parent=1 // pred_check_branch
      %117 = sbr.rel (0) target = $region57
    $region56: #{financial_transformer_forward.1} parent=1 // pred_region
      %118 = dma.done [#allocation8], 4096
    $region57: #{financial_transformer_forward.1} parent=1 // pred_fallthru
      _
    // Predicated region
    $region58: #{financial_transformer_forward.1} parent=1 // pred_check
      _
    $region59: #{financial_transformer_forward.1} parent=1 // pred_check_branch
      %120 = sbr.rel (0) target = $region61
    $region60: #{financial_transformer_forward.1} parent=1 // pred_region
      %121 = dma.done [#allocation8], 4096
    $region61: #{financial_transformer_forward.1} parent=1 // pred_fallthru
      _
    // Predicated region
    $region62: #{financial_transformer_forward.1} parent=1 // pred_check
      _
    $region63: #{financial_transformer_forward.1} parent=1 // pred_check_branch
      %123 = sbr.rel (0) target = $region65
    $region64: #{financial_transformer_forward.1} parent=1 // pred_region
      %124 = dma.done [#allocation11], 1024
    $region65: #{financial_transformer_forward.1} parent=1 // pred_fallthru
      _
    // Predicated region
    $region66: #{financial_transformer_forward.1} parent=1 // pred_check
      _
    $region67: #{financial_transformer_forward.1} parent=1 // pred_check_branch
      %126 = sbr.rel (0) target = $region69
    $region68: #{financial_transformer_forward.1} parent=1 // pred_region
      %127 = dma.done [#allocation11], 512
    $region69: #{financial_transformer_forward.1} parent=1 // pred_fallthru
      _
    %v129 = vld [vmem:[%s8] sm:$0xff]
    %v130 = vld [vmem:[%s8 + $0x8] sm:$0xff]
    %v131 = vld [vmem:[#allocation12] sm:$0xff]
    %v132 = vld [vmem:[#allocation12 + $0x8] sm:$0xff]
    %v133 = vld [vmem:[#allocation12 + $0x10] sm:$0xff]
    %v134 = vld [vmem:[#allocation12 + $0x18] sm:$0xff]
    %v135 = vld [vmem:[%s0] sm:$0xf]
    %v136 = vld [vmem:[%s0 + $0x4] sm:$0xf]
    %v137 = vld [vmem:[%s1] sm:$0xf]
    %v138 = vld [vmem:[%s1 + $0x4] sm:$0xf]
    %v139 = vld [vmem:[%s1 + $0x8] sm:$0xf]
    %v140 = vld [vmem:[%s1 + $0xc] sm:$0xf]
    %v141 = vld [vmem:[%s1 + $0x10] sm:$0xf]
    %v142 = vld [vmem:[%s1 + $0x14] sm:$0xf]
    %v143 = vld [vmem:[%s1 + $0x18] sm:$0xf]
    %v144 = vld [vmem:[%s1 + $0x1c] sm:$0xf]
    %v145 = vlaneseq
    %v146 = vshrl.u32 %v145, 7
    %v147 = vsub.s32 0, %v146
    %v148 = vrot.slane %v129, %v147
    %v151 = vunpack.c.l.b16 %v135
    %v152 = vunpack.c.l.b16 %v136
    %v153 = vpack.c.b16 %v152, %v151
    %v162 = vunpack.c.l.b16 %v137
    %v163 = vunpack.c.l.b16 %v138
    %v164 = vunpack.c.l.b16 %v139
    %v165 = vunpack.c.l.b16 %v140
    %v166 = vunpack.c.l.b16 %v141
    %v167 = vunpack.c.l.b16 %v142
    %v168 = vunpack.c.l.b16 %v143
    %v169 = vunpack.c.l.b16 %v144
    %v170 = vpack.c.b16 %v163, %v162
    %v171 = vpack.c.b16 %v165, %v164
    %v172 = vpack.c.b16 %v167, %v166
    %v173 = vpack.c.b16 %v169, %v168
    %vm178 = vcmask 523264
    %v180 = vsel %vm178, %v153, 0
    %182 = vmatprep.subr.bf16.mxu0 0
    %183 = vmatpush1.bf16.msra.mxu0 %v170
    %184 = vmatprep.subr.bf16.mxu0 0
    %185 = vmatpush1.bf16.msra.mxu0 %v171
    %186 = vmatprep.subr.bf16.mxu0 0
    %187 = vmatpush1.bf16.msra.mxu0 %v172
    %188 = vmatprep.subr.bf16.mxu0 0
    %189 = vmatpush1.bf16.msra.mxu0 %v173
    %190 = vmatprep.subr.bf16.mxu0 0
    %191 = vmatpush1.bf16.msra.mxu0 0
    %192 = vmatprep.subr.bf16.mxu0 0
    %193 = vmatpush1.bf16.msra.mxu0 0
    %194 = vmatprep.subr.bf16.mxu0 0
    %195 = vmatpush1.bf16.msra.mxu0 0
    %196 = vmatprep.subr.bf16.mxu0 0
    %197 = vmatpush1.bf16.msra.mxu0 0
    %198 = vmatprep.subr.bf16.mxu0 0
    %199 = vmatpush1.bf16.msra.mxu0 0
    %200 = vmatprep.subr.bf16.mxu0 0
    %201 = vmatpush1.bf16.msra.mxu0 0
    %202 = vmatprep.subr.bf16.mxu0 0
    %203 = vmatpush1.bf16.msra.mxu0 0
    %204 = vmatprep.subr.bf16.mxu0 0
    %205 = vmatpush1.bf16.msra.mxu0 0
    %206 = vmatprep.subr.bf16.mxu0 0
    %207 = vmatpush1.bf16.msra.mxu0 0
    %208 = vmatprep.subr.bf16.mxu0 0
    %209 = vmatpush1.bf16.msra.mxu0 0
    %210 = vmatprep.subr.bf16.mxu0 0
    %211 = vmatpush1.bf16.msra.mxu0 0
    %212 = vmatprep.subr.bf16.mxu0 0
    %213 = vmatpush1.bf16.msra.mxu0 0
    %214 = vmatprep.mubr.bf16.mxu0 0
    %215 = vmatmul.mubr.bf16.gmra.mrb[0].mxu0 %v180
    %v216 = vpop.f32.mrb[0].mxu0
    %v217 = vadd.f32 %v148, %v216
    %v218 = vpop.f32.mrb[0].mxu0
    %v219 = vpop.f32.mrb[0].mxu0
    %v220 = vadd.f32 %v148, %v219
    %v221 = vpop.f32.mrb[0].mxu0
    %222 = vdwg.mxu0
    %v223 = vpack.c.bf16 %v220, %v217
    %v224 = vld [vmem:[#allocation2] sm:$0xf]
    %v225 = vld [vmem:[#allocation2 + $0x4] sm:$0xf]
    %v226 = vld [vmem:[#allocation2 + $0x8] sm:$0xf]
    %v227 = vld [vmem:[#allocation2 + $0xc] sm:$0xf]
    %v228 = vld [vmem:[#allocation2 + $0x10] sm:$0xf]
    %v229 = vld [vmem:[#allocation2 + $0x14] sm:$0xf]
    %v230 = vld [vmem:[#allocation2 + $0x18] sm:$0xf]
    %v231 = vld [vmem:[#allocation2 + $0x1c] sm:$0xf]
    %v232 = vld [vmem:[#allocation2 + $0x20] sm:$0xf]
    %v233 = vld [vmem:[#allocation2 + $0x24] sm:$0xf]
    %v234 = vld [vmem:[#allocation2 + $0x28] sm:$0xf]
    %v235 = vld [vmem:[#allocation2 + $0x2c] sm:$0xf]
    %v236 = vld [vmem:[#allocation2 + $0x30] sm:$0xf]
    %v237 = vld [vmem:[#allocation2 + $0x34] sm:$0xf]
    %v238 = vld [vmem:[#allocation2 + $0x38] sm:$0xf]
    %v239 = vld [vmem:[#allocation2 + $0x3c] sm:$0xf]
    %v256 = vunpack.c.l.b16 %v224
    %v257 = vunpack.c.l.b16 %v225
    %v258 = vunpack.c.l.b16 %v226
    %v259 = vunpack.c.l.b16 %v227
    %v260 = vunpack.c.l.b16 %v228
    %v261 = vunpack.c.l.b16 %v229
    %v262 = vunpack.c.l.b16 %v230
    %v263 = vunpack.c.l.b16 %v231
    %v264 = vunpack.c.l.b16 %v232
    %v265 = vunpack.c.l.b16 %v233
    %v266 = vunpack.c.l.b16 %v234
    %v267 = vunpack.c.l.b16 %v235
    %v268 = vunpack.c.l.b16 %v236
    %v269 = vunpack.c.l.b16 %v237
    %v270 = vunpack.c.l.b16 %v238
    %v271 = vunpack.c.l.b16 %v239
    %v272 = vpack.c.b16 %v257, %v256
    %v273 = vpack.c.b16 %v259, %v258
    %v274 = vpack.c.b16 %v261, %v260
    %v275 = vpack.c.b16 %v263, %v262
    %v276 = vpack.c.b16 %v265, %v264
    %v277 = vpack.c.b16 %v267, %v266
    %v278 = vpack.c.b16 %v269, %v268
    %v279 = vpack.c.b16 %v271, %v270
    %288 = vmatprep.subr.bf16.mxu0 0
    %289 = vmatpush1.bf16.msra.mxu0 %v272
    %290 = vmatprep.subr.bf16.mxu0 0
    %291 = vmatpush1.bf16.msra.mxu0 %v273
    %292 = vmatprep.subr.bf16.mxu0 0
    %293 = vmatpush1.bf16.msra.mxu0 %v274
    %294 = vmatprep.subr.bf16.mxu0 0
    %295 = vmatpush1.bf16.msra.mxu0 %v275
    %296 = vmatprep.subr.bf16.mxu0 0
    %297 = vmatpush1.bf16.msra.mxu0 %v276
    %298 = vmatprep.subr.bf16.mxu0 0
    %299 = vmatpush1.bf16.msra.mxu0 %v277
    %300 = vmatprep.subr.bf16.mxu0 0
    %301 = vmatpush1.bf16.msra.mxu0 %v278
    %302 = vmatprep.subr.bf16.mxu0 0
    %303 = vmatpush1.bf16.msra.mxu0 %v279
    %304 = vmatprep.subr.bf16.mxu0 0
    %305 = vmatpush1.bf16.msra.mxu0 0
    %306 = vmatprep.subr.bf16.mxu0 0
    %307 = vmatpush1.bf16.msra.mxu0 0
    %308 = vmatprep.subr.bf16.mxu0 0
    %309 = vmatpush1.bf16.msra.mxu0 0
    %310 = vmatprep.subr.bf16.mxu0 0
    %311 = vmatpush1.bf16.msra.mxu0 0
    %312 = vmatprep.subr.bf16.mxu0 0
    %313 = vmatpush1.bf16.msra.mxu0 0
    %314 = vmatprep.subr.bf16.mxu0 0
    %315 = vmatpush1.bf16.msra.mxu0 0
    %316 = vmatprep.subr.bf16.mxu0 0
    %317 = vmatpush1.bf16.msra.mxu0 0
    %318 = vmatprep.subr.bf16.mxu0 0
    %319 = vmatpush1.bf16.msra.mxu0 0
    %320 = vmatprep.mubr.bf16.mxu0 0
    %321 = vmatmul.mubr.bf16.gmra.mrb[0].mxu0 %v223
    %v322 = vpop.f32.mrb[0].mxu0
    %v323 = vadd.f32 0.0, %v322
    %v324 = vpop.f32.mrb[0].mxu0
    %v325 = vpop.f32.mrb[0].mxu0
    %v326 = vadd.f32 0.0, %v325
    %v327 = vpop.f32.mrb[0].mxu0
    %328 = vdwg.mxu0
    %v329 = vadd.f32 %v217, %v323
    %v330 = vadd.f32 %v220, %v326
    %v331 = vlaneseq
    %v332 = vshrl.u32 %v331, 7
    %v333 = vsub.s32 1, %v332
    %v334 = vrot.slane %v129, %v333
    %v335 = vadd.f32 %v329, %v334
    %v336 = vadd.f32 %v330, %v334
    %337 = vadd.xlane.f32.xlu0 %v335
    %v338 = vpop.xlane.xlu0 %337
    %339 = vadd.xlane.f32.xlu0 %v336
    %v340 = vpop.xlane.xlu0 %339
    %v341 = vrcp.pop 128.0
    %v342 = vmul.f32 %v338, %v341
    %v343 = vmul.f32 %v340, %v341
    %v344 = vsub.f32 %v335, %v342
    %v345 = vsub.f32 %v336, %v343
    %v346 = vmul.f32 %v344, %v344
    %v347 = vmul.f32 %v345, %v345
    %348 = vadd.xlane.f32.xlu0 %v346
    %v349 = vpop.xlane.xlu0 %348
    %350 = vadd.xlane.f32.xlu0 %v347
    %v351 = vpop.xlane.xlu0 %350
    %v352 = vmul.f32 %v349, %v341
    %v353 = vmul.f32 %v351, %v341
    %v354 = vadd.f32 %v352, 1e-05
    %v355 = vadd.f32 %v353, 1e-05
    %v356 = vrsqrt.pop %v354
    %v357 = vrsqrt.pop %v355
    %v358 = vmul.f32 %v344, %v356
    %v359 = vmul.f32 %v345, %v357
    %v360 = vlaneseq
    %v361 = vshrl.u32 %v360, 7
    %v362 = vsub.s32 5, %v361
    %v363 = vrot.slane %v129, %v362
    %v364 = vmul.f32 %v358, %v363
    %v365 = vmul.f32 %v359, %v363
    %v366 = vlaneseq
    %v367 = vshrl.u32 %v366, 7
    %v368 = vsub.s32 7, %v367
    %v369 = vrot.slane %v129, %v368
    %v370 = vadd.f32 %v364, %v369
    %v371 = vadd.f32 %v365, %v369
    %v372 = vpack.c.bf16 %v371, %v370
    %v373 = vld [vmem:[#allocation4] sm:$0xff]
    %v374 = vld [vmem:[#allocation4 + $0x8] sm:$0xff]
    %v375 = vld [vmem:[#allocation4 + $0x10] sm:$0xff]
    %v376 = vld [vmem:[#allocation4 + $0x18] sm:$0xff]
    %v377 = vld [vmem:[#allocation4 + $0x20] sm:$0xff]
    %v378 = vld [vmem:[#allocation4 + $0x28] sm:$0xff]
    %v379 = vld [vmem:[#allocation4 + $0x30] sm:$0xff]
    %v380 = vld [vmem:[#allocation4 + $0x38] sm:$0xff]
    %v381 = vld [vmem:[#allocation4 + $0x40] sm:$0xff]
    %v382 = vld [vmem:[#allocation4 + $0x48] sm:$0xff]
    %v383 = vld [vmem:[#allocation4 + $0x50] sm:$0xff]
    %v384 = vld [vmem:[#allocation4 + $0x58] sm:$0xff]
    %v385 = vld [vmem:[#allocation4 + $0x60] sm:$0xff]
    %v386 = vld [vmem:[#allocation4 + $0x68] sm:$0xff]
    %v387 = vld [vmem:[#allocation4 + $0x70] sm:$0xff]
    %v388 = vld [vmem:[#allocation4 + $0x78] sm:$0xff]
    %v389 = vld [vmem:[#allocation4 + $0x80] sm:$0xff]
    %v390 = vld [vmem:[#allocation4 + $0x88] sm:$0xff]
    %v391 = vld [vmem:[#allocation4 + $0x90] sm:$0xff]
    %v392 = vld [vmem:[#allocation4 + $0x98] sm:$0xff]
    %v393 = vld [vmem:[#allocation4 + $0xa0] sm:$0xff]
    %v394 = vld [vmem:[#allocation4 + $0xa8] sm:$0xff]
    %v395 = vld [vmem:[#allocation4 + $0xb0] sm:$0xff]
    %v396 = vld [vmem:[#allocation4 + $0xb8] sm:$0xff]
    %v397 = vld [vmem:[#allocation4 + $0xc0] sm:$0xff]
    %v398 = vld [vmem:[#allocation4 + $0xc8] sm:$0xff]
    %v399 = vld [vmem:[#allocation4 + $0xd0] sm:$0xff]
    %v400 = vld [vmem:[#allocation4 + $0xd8] sm:$0xff]
    %v401 = vld [vmem:[#allocation4 + $0xe0] sm:$0xff]
    %v402 = vld [vmem:[#allocation4 + $0xe8] sm:$0xff]
    %v403 = vld [vmem:[#allocation4 + $0xf0] sm:$0xff]
    %v404 = vld [vmem:[#allocation4 + $0xf8] sm:$0xff]
    %v405 = vlaneseq
    %v406 = vshrl.u32 %v405, 7
    %v407 = vsub.s32 0, %v406
    %v408 = vrot.slane %v131, %v407
    %v409 = vlaneseq
    %v410 = vshrl.u32 %v409, 7
    %v411 = vsub.s32 0, %v410
    %v412 = vrot.slane %v132, %v411
    %v413 = vlaneseq
    %v414 = vshrl.u32 %v413, 7
    %v415 = vsub.s32 0, %v414
    %v416 = vrot.slane %v133, %v415
    %v417 = vlaneseq
    %v418 = vshrl.u32 %v417, 7
    %v419 = vsub.s32 0, %v418
    %v420 = vrot.slane %v134, %v419
    %v453 = vunpack.c.l.b16 %v373
    %v454 = vunpack.c.h.b16 %v373
    %v455 = vunpack.c.l.b16 %v374
    %v456 = vunpack.c.h.b16 %v374
    %v457 = vunpack.c.l.b16 %v375
    %v458 = vunpack.c.h.b16 %v375
    %v459 = vunpack.c.l.b16 %v376
    %v460 = vunpack.c.h.b16 %v376
    %v461 = vunpack.c.l.b16 %v377
    %v462 = vunpack.c.h.b16 %v377
    %v463 = vunpack.c.l.b16 %v378
    %v464 = vunpack.c.h.b16 %v378
    %v465 = vunpack.c.l.b16 %v379
    %v466 = vunpack.c.h.b16 %v379
    %v467 = vunpack.c.l.b16 %v380
    %v468 = vunpack.c.h.b16 %v380
    %v469 = vunpack.c.l.b16 %v381
    %v470 = vunpack.c.h.b16 %v381
    %v471 = vunpack.c.l.b16 %v382
    %v472 = vunpack.c.h.b16 %v382
    %v473 = vunpack.c.l.b16 %v383
    %v474 = vunpack.c.h.b16 %v383
    %v475 = vunpack.c.l.b16 %v384
    %v476 = vunpack.c.h.b16 %v384
    %v477 = vunpack.c.l.b16 %v385
    %v478 = vunpack.c.h.b16 %v385
    %v479 = vunpack.c.l.b16 %v386
    %v480 = vunpack.c.h.b16 %v386
    %v481 = vunpack.c.l.b16 %v387
    %v482 = vunpack.c.h.b16 %v387
    %v483 = vunpack.c.l.b16 %v388
    %v484 = vunpack.c.h.b16 %v388
    %v485 = vunpack.c.l.b16 %v389
    %v486 = vunpack.c.h.b16 %v389
    %v487 = vunpack.c.l.b16 %v390
    %v488 = vunpack.c.h.b16 %v390
    %v489 = vunpack.c.l.b16 %v391
    %v490 = vunpack.c.h.b16 %v391
    %v491 = vunpack.c.l.b16 %v392
    %v492 = vunpack.c.h.b16 %v392
    %v493 = vunpack.c.l.b16 %v393
    %v494 = vunpack.c.h.b16 %v393
    %v495 = vunpack.c.l.b16 %v394
    %v496 = vunpack.c.h.b16 %v394
    %v497 = vunpack.c.l.b16 %v395
    %v498 = vunpack.c.h.b16 %v395
    %v499 = vunpack.c.l.b16 %v396
    %v500 = vunpack.c.h.b16 %v396
    %v501 = vunpack.c.l.b16 %v397
    %v502 = vunpack.c.h.b16 %v397
    %v503 = vunpack.c.l.b16 %v398
    %v504 = vunpack.c.h.b16 %v398
    %v505 = vunpack.c.l.b16 %v399
    %v506 = vunpack.c.h.b16 %v399
    %v507 = vunpack.c.l.b16 %v400
    %v508 = vunpack.c.h.b16 %v400
    %v509 = vunpack.c.l.b16 %v401
    %v510 = vunpack.c.h.b16 %v401
    %v511 = vunpack.c.l.b16 %v402
    %v512 = vunpack.c.h.b16 %v402
    %v513 = vunpack.c.l.b16 %v403
    %v514 = vunpack.c.h.b16 %v403
    %v515 = vunpack.c.l.b16 %v404
    %v516 = vunpack.c.h.b16 %v404
    %v517 = vpack.c.b16 %v457, %v453
    %v518 = vpack.c.b16 %v458, %v454
    %v519 = vpack.c.b16 %v459, %v455
    %v520 = vpack.c.b16 %v460, %v456
    %v521 = vpack.c.b16 %v465, %v461
    %v522 = vpack.c.b16 %v466, %v462
    %v523 = vpack.c.b16 %v467, %v463
    %v524 = vpack.c.b16 %v468, %v464
    %v525 = vpack.c.b16 %v473, %v469
    %v526 = vpack.c.b16 %v474, %v470
    %v527 = vpack.c.b16 %v475, %v471
    %v528 = vpack.c.b16 %v476, %v472
    %v529 = vpack.c.b16 %v481, %v477
    %v530 = vpack.c.b16 %v482, %v478
    %v531 = vpack.c.b16 %v483, %v479
    %v532 = vpack.c.b16 %v484, %v480
    %v533 = vpack.c.b16 %v489, %v485
    %v534 = vpack.c.b16 %v490, %v486
    %v535 = vpack.c.b16 %v491, %v487
    %v536 = vpack.c.b16 %v492, %v488
    %v537 = vpack.c.b16 %v497, %v493
    %v538 = vpack.c.b16 %v498, %v494
    %v539 = vpack.c.b16 %v499, %v495
    %v540 = vpack.c.b16 %v500, %v496
    %v541 = vpack.c.b16 %v505, %v501
    %v542 = vpack.c.b16 %v506, %v502
    %v543 = vpack.c.b16 %v507, %v503
    %v544 = vpack.c.b16 %v508, %v504
    %v545 = vpack.c.b16 %v513, %v509
    %v546 = vpack.c.b16 %v514, %v510
    %v547 = vpack.c.b16 %v515, %v511
    %v548 = vpack.c.b16 %v516, %v512
    %581 = vmatprep.subr.bf16.mxu0 %v518
    %582 = vmatpush1.bf16.msra.mxu0 %v517
    %583 = vmatprep.subr.bf16.mxu0 %v522
    %584 = vmatpush1.bf16.msra.mxu0 %v521
    %585 = vmatprep.subr.bf16.mxu0 %v526
    %586 = vmatpush1.bf16.msra.mxu0 %v525
    %587 = vmatprep.subr.bf16.mxu0 %v530
    %588 = vmatpush1.bf16.msra.mxu0 %v529
    %589 = vmatprep.subr.bf16.mxu0 %v534
    %590 = vmatpush1.bf16.msra.mxu0 %v533
    %591 = vmatprep.subr.bf16.mxu0 %v538
    %592 = vmatpush1.bf16.msra.mxu0 %v537
    %593 = vmatprep.subr.bf16.mxu0 %v542
    %594 = vmatpush1.bf16.msra.mxu0 %v541
    %595 = vmatprep.subr.bf16.mxu0 %v546
    %596 = vmatpush1.bf16.msra.mxu0 %v545
    %597 = vmatprep.subr.bf16.mxu0 0
    %598 = vmatpush1.bf16.msra.mxu0 0
    %599 = vmatprep.subr.bf16.mxu0 0
    %600 = vmatpush1.bf16.msra.mxu0 0
    %601 = vmatprep.subr.bf16.mxu0 0
    %602 = vmatpush1.bf16.msra.mxu0 0
    %603 = vmatprep.subr.bf16.mxu0 0
    %604 = vmatpush1.bf16.msra.mxu0 0
    %605 = vmatprep.subr.bf16.mxu0 0
    %606 = vmatpush1.bf16.msra.mxu0 0
    %607 = vmatprep.subr.bf16.mxu0 0
    %608 = vmatpush1.bf16.msra.mxu0 0
    %609 = vmatprep.subr.bf16.mxu0 0
    %610 = vmatpush1.bf16.msra.mxu0 0
    %611 = vmatprep.subr.bf16.mxu0 0
    %612 = vmatpush1.bf16.msra.mxu0 0
    %613 = vmatprep.mubr.bf16.mxu0 0
    %614 = vmatmul.mubr.bf16.gmra.mrb[0].mxu0 %v372
    %v615 = vpop.f32.mrb[0].mxu0
    %v616 = vadd.f32 %v408, %v615
    %v617 = vpop.f32.mrb[0].mxu0
    %v618 = vadd.f32 %v412, %v617
    %v619 = vpop.f32.mrb[0].mxu0
    %v620 = vadd.f32 %v408, %v619
    %v621 = vpop.f32.mrb[0].mxu0
    %v622 = vadd.f32 %v412, %v621
    %623 = vdwg.mxu0
    %624 = vmatprep.subr.bf16.mxu0 %v520
    %625 = vmatpush1.bf16.msra.mxu0 %v519
    %626 = vmatprep.subr.bf16.mxu0 %v524
    %627 = vmatpush1.bf16.msra.mxu0 %v523
    %628 = vmatprep.subr.bf16.mxu0 %v528
    %629 = vmatpush1.bf16.msra.mxu0 %v527
    %630 = vmatprep.subr.bf16.mxu0 %v532
    %631 = vmatpush1.bf16.msra.mxu0 %v531
    %632 = vmatprep.subr.bf16.mxu0 %v536
    %633 = vmatpush1.bf16.msra.mxu0 %v535
    %634 = vmatprep.subr.bf16.mxu0 %v540
    %635 = vmatpush1.bf16.msra.mxu0 %v539
    %636 = vmatprep.subr.bf16.mxu0 %v544
    %637 = vmatpush1.bf16.msra.mxu0 %v543
    %638 = vmatprep.subr.bf16.mxu0 %v548
    %639 = vmatpush1.bf16.msra.mxu0 %v547
    %640 = vmatprep.subr.bf16.mxu0 0
    %641 = vmatpush1.bf16.msra.mxu0 0
    %642 = vmatprep.subr.bf16.mxu0 0
    %643 = vmatpush1.bf16.msra.mxu0 0
    %644 = vmatprep.subr.bf16.mxu0 0
    %645 = vmatpush1.bf16.msra.mxu0 0
    %646 = vmatprep.subr.bf16.mxu0 0
    %647 = vmatpush1.bf16.msra.mxu0 0
    %648 = vmatprep.subr.bf16.mxu0 0
    %649 = vmatpush1.bf16.msra.mxu0 0
    %650 = vmatprep.subr.bf16.mxu0 0
    %651 = vmatpush1.bf16.msra.mxu0 0
    %652 = vmatprep.subr.bf16.mxu0 0
    %653 = vmatpush1.bf16.msra.mxu0 0
    %654 = vmatprep.subr.bf16.mxu0 0
    %655 = vmatpush1.bf16.msra.mxu0 0
    %656 = vmatprep.mubr.bf16.mxu0 0
    %657 = vmatmul.mubr.bf16.gmra.mrb[0].mxu0 %v372
    %v658 = vpop.f32.mrb[0].mxu0
    %v659 = vadd.f32 %v416, %v658
    %v660 = vpop.f32.mrb[0].mxu0
    %v661 = vadd.f32 %v420, %v660
    %v662 = vpop.f32.mrb[0].mxu0
    %v663 = vadd.f32 %v416, %v662
    %v664 = vpop.f32.mrb[0].mxu0
    %v665 = vadd.f32 %v420, %v664
    %666 = vdwg.mxu0
    %v667 = vmax.f32 %v616, 0.0
    %v668 = vmax.f32 %v618, 0.0
    %v669 = vmax.f32 %v659, 0.0
    %v670 = vmax.f32 %v661, 0.0
    %v671 = vmax.f32 %v620, 0.0
    %v672 = vmax.f32 %v622, 0.0
    %v673 = vmax.f32 %v663, 0.0
    %v674 = vmax.f32 %v665, 0.0
    %v675 = vpack.c.bf16 %v671, %v667
    %v676 = vpack.c.bf16 %v672, %v668
    %v677 = vpack.c.bf16 %v673, %v669
    %v678 = vpack.c.bf16 %v674, %v670
    %v679 = vld [vmem:[#allocation6] sm:$0xf]
    %v680 = vld [vmem:[#allocation6 + $0x4] sm:$0xf]
    %v681 = vld [vmem:[#allocation6 + $0x8] sm:$0xf]
    %v682 = vld [vmem:[#allocation6 + $0xc] sm:$0xf]
    %v683 = vld [vmem:[#allocation6 + $0x10] sm:$0xf]
    %v684 = vld [vmem:[#allocation6 + $0x14] sm:$0xf]
    %v685 = vld [vmem:[#allocation6 + $0x18] sm:$0xf]
    %v686 = vld [vmem:[#allocation6 + $0x1c] sm:$0xf]
    %v687 = vld [vmem:[#allocation6 + $0x20] sm:$0xf]
    %v688 = vld [vmem:[#allocation6 + $0x24] sm:$0xf]
    %v689 = vld [vmem:[#allocation6 + $0x28] sm:$0xf]
    %v690 = vld [vmem:[#allocation6 + $0x2c] sm:$0xf]
    %v691 = vld [vmem:[#allocation6 + $0x30] sm:$0xf]
    %v692 = vld [vmem:[#allocation6 + $0x34] sm:$0xf]
    %v693 = vld [vmem:[#allocation6 + $0x38] sm:$0xf]
    %v694 = vld [vmem:[#allocation6 + $0x3c] sm:$0xf]
    %v695 = vld [vmem:[#allocation6 + $0x40] sm:$0xf]
    %v696 = vld [vmem:[#allocation6 + $0x44] sm:$0xf]
    %v697 = vld [vmem:[#allocation6 + $0x48] sm:$0xf]
    %v698 = vld [vmem:[#allocation6 + $0x4c] sm:$0xf]
    %v699 = vld [vmem:[#allocation6 + $0x50] sm:$0xf]
    %v700 = vld [vmem:[#allocation6 + $0x54] sm:$0xf]
    %v701 = vld [vmem:[#allocation6 + $0x58] sm:$0xf]
    %v702 = vld [vmem:[#allocation6 + $0x5c] sm:$0xf]
    %v703 = vld [vmem:[#allocation6 + $0x60] sm:$0xf]
    %v704 = vld [vmem:[#allocation6 + $0x64] sm:$0xf]
    %v705 = vld [vmem:[#allocation6 + $0x68] sm:$0xf]
    %v706 = vld [vmem:[#allocation6 + $0x6c] sm:$0xf]
    %v707 = vld [vmem:[#allocation6 + $0x70] sm:$0xf]
    %v708 = vld [vmem:[#allocation6 + $0x74] sm:$0xf]
    %v709 = vld [vmem:[#allocation6 + $0x78] sm:$0xf]
    %v710 = vld [vmem:[#allocation6 + $0x7c] sm:$0xf]
    %v711 = vld [vmem:[#allocation6 + $0x80] sm:$0xf]
    %v712 = vld [vmem:[#allocation6 + $0x84] sm:$0xf]
    %v713 = vld [vmem:[#allocation6 + $0x88] sm:$0xf]
    %v714 = vld [vmem:[#allocation6 + $0x8c] sm:$0xf]
    %v715 = vld [vmem:[#allocation6 + $0x90] sm:$0xf]
    %v716 = vld [vmem:[#allocation6 + $0x94] sm:$0xf]
    %v717 = vld [vmem:[#allocation6 + $0x98] sm:$0xf]
    %v718 = vld [vmem:[#allocation6 + $0x9c] sm:$0xf]
    %v719 = vld [vmem:[#allocation6 + $0xa0] sm:$0xf]
    %v720 = vld [vmem:[#allocation6 + $0xa4] sm:$0xf]
    %v721 = vld [vmem:[#allocation6 + $0xa8] sm:$0xf]
    %v722 = vld [vmem:[#allocation6 + $0xac] sm:$0xf]
    %v723 = vld [vmem:[#allocation6 + $0xb0] sm:$0xf]
    %v724 = vld [vmem:[#allocation6 + $0xb4] sm:$0xf]
    %v725 = vld [vmem:[#allocation6 + $0xb8] sm:$0xf]
    %v726 = vld [vmem:[#allocation6 + $0xbc] sm:$0xf]
    %v727 = vld [vmem:[#allocation6 + $0xc0] sm:$0xf]
    %v728 = vld [vmem:[#allocation6 + $0xc4] sm:$0xf]
    %v729 = vld [vmem:[#allocation6 + $0xc8] sm:$0xf]
    %v730 = vld [vmem:[#allocation6 + $0xcc] sm:$0xf]
    %v731 = vld [vmem:[#allocation6 + $0xd0] sm:$0xf]
    %v732 = vld [vmem:[#allocation6 + $0xd4] sm:$0xf]
    %v733 = vld [vmem:[#allocation6 + $0xd8] sm:$0xf]
    %v734 = vld [vmem:[#allocation6 + $0xdc] sm:$0xf]
    %v735 = vld [vmem:[#allocation6 + $0xe0] sm:$0xf]
    %v736 = vld [vmem:[#allocation6 + $0xe4] sm:$0xf]
    %v737 = vld [vmem:[#allocation6 + $0xe8] sm:$0xf]
    %v738 = vld [vmem:[#allocation6 + $0xec] sm:$0xf]
    %v739 = vld [vmem:[#allocation6 + $0xf0] sm:$0xf]
    %v740 = vld [vmem:[#allocation6 + $0xf4] sm:$0xf]
    %v741 = vld [vmem:[#allocation6 + $0xf8] sm:$0xf]
    %v742 = vld [vmem:[#allocation6 + $0xfc] sm:$0xf]
    %v743 = vlaneseq
    %v744 = vshrl.u32 %v743, 7
    %v745 = vsub.s32 3, %v744
    %v746 = vrot.slane %v129, %v745
    %v811 = vunpack.c.l.b16 %v679
    %v812 = vunpack.c.l.b16 %v680
    %v813 = vunpack.c.l.b16 %v681
    %v814 = vunpack.c.l.b16 %v682
    %v815 = vunpack.c.l.b16 %v683
    %v816 = vunpack.c.l.b16 %v684
    %v817 = vunpack.c.l.b16 %v685
    %v818 = vunpack.c.l.b16 %v686
    %v819 = vunpack.c.l.b16 %v687
    %v820 = vunpack.c.l.b16 %v688
    %v821 = vunpack.c.l.b16 %v689
    %v822 = vunpack.c.l.b16 %v690
    %v823 = vunpack.c.l.b16 %v691
    %v824 = vunpack.c.l.b16 %v692
    %v825 = vunpack.c.l.b16 %v693
    %v826 = vunpack.c.l.b16 %v694
    %v827 = vunpack.c.l.b16 %v695
    %v828 = vunpack.c.l.b16 %v696
    %v829 = vunpack.c.l.b16 %v697
    %v830 = vunpack.c.l.b16 %v698
    %v831 = vunpack.c.l.b16 %v699
    %v832 = vunpack.c.l.b16 %v700
    %v833 = vunpack.c.l.b16 %v701
    %v834 = vunpack.c.l.b16 %v702
    %v835 = vunpack.c.l.b16 %v703
    %v836 = vunpack.c.l.b16 %v704
    %v837 = vunpack.c.l.b16 %v705
    %v838 = vunpack.c.l.b16 %v706
    %v839 = vunpack.c.l.b16 %v707
    %v840 = vunpack.c.l.b16 %v708
    %v841 = vunpack.c.l.b16 %v709
    %v842 = vunpack.c.l.b16 %v710
    %v843 = vunpack.c.l.b16 %v711
    %v844 = vunpack.c.l.b16 %v712
    %v845 = vunpack.c.l.b16 %v713
    %v846 = vunpack.c.l.b16 %v714
    %v847 = vunpack.c.l.b16 %v715
    %v848 = vunpack.c.l.b16 %v716
    %v849 = vunpack.c.l.b16 %v717
    %v850 = vunpack.c.l.b16 %v718
    %v851 = vunpack.c.l.b16 %v719
    %v852 = vunpack.c.l.b16 %v720
    %v853 = vunpack.c.l.b16 %v721
    %v854 = vunpack.c.l.b16 %v722
    %v855 = vunpack.c.l.b16 %v723
    %v856 = vunpack.c.l.b16 %v724
    %v857 = vunpack.c.l.b16 %v725
    %v858 = vunpack.c.l.b16 %v726
    %v859 = vunpack.c.l.b16 %v727
    %v860 = vunpack.c.l.b16 %v728
    %v861 = vunpack.c.l.b16 %v729
    %v862 = vunpack.c.l.b16 %v730
    %v863 = vunpack.c.l.b16 %v731
    %v864 = vunpack.c.l.b16 %v732
    %v865 = vunpack.c.l.b16 %v733
    %v866 = vunpack.c.l.b16 %v734
    %v867 = vunpack.c.l.b16 %v735
    %v868 = vunpack.c.l.b16 %v736
    %v869 = vunpack.c.l.b16 %v737
    %v870 = vunpack.c.l.b16 %v738
    %v871 = vunpack.c.l.b16 %v739
    %v872 = vunpack.c.l.b16 %v740
    %v873 = vunpack.c.l.b16 %v741
    %v874 = vunpack.c.l.b16 %v742
    %v875 = vpack.c.b16 %v812, %v811
    %v876 = vpack.c.b16 %v814, %v813
    %v877 = vpack.c.b16 %v816, %v815
    %v878 = vpack.c.b16 %v818, %v817
    %v879 = vpack.c.b16 %v820, %v819
    %v880 = vpack.c.b16 %v822, %v821
    %v881 = vpack.c.b16 %v824, %v823
    %v882 = vpack.c.b16 %v826, %v825
    %v883 = vpack.c.b16 %v828, %v827
    %v884 = vpack.c.b16 %v830, %v829
    %v885 = vpack.c.b16 %v832, %v831
    %v886 = vpack.c.b16 %v834, %v833
    %v887 = vpack.c.b16 %v836, %v835
    %v888 = vpack.c.b16 %v838, %v837
    %v889 = vpack.c.b16 %v840, %v839
    %v890 = vpack.c.b16 %v842, %v841
    %v891 = vpack.c.b16 %v844, %v843
    %v892 = vpack.c.b16 %v846, %v845
    %v893 = vpack.c.b16 %v848, %v847
    %v894 = vpack.c.b16 %v850, %v849
    %v895 = vpack.c.b16 %v852, %v851
    %v896 = vpack.c.b16 %v854, %v853
    %v897 = vpack.c.b16 %v856, %v855
    %v898 = vpack.c.b16 %v858, %v857
    %v899 = vpack.c.b16 %v860, %v859
    %v900 = vpack.c.b16 %v862, %v861
    %v901 = vpack.c.b16 %v864, %v863
    %v902 = vpack.c.b16 %v866, %v865
    %v903 = vpack.c.b16 %v868, %v867
    %v904 = vpack.c.b16 %v870, %v869
    %v905 = vpack.c.b16 %v872, %v871
    %v906 = vpack.c.b16 %v874, %v873
    %939 = vmatprep.subr.bf16.mxu0 0
    %940 = vmatpush1.bf16.msra.mxu0 %v875
    %941 = vmatprep.subr.bf16.mxu0 0
    %942 = vmatpush1.bf16.msra.mxu0 %v876
    %943 = vmatprep.subr.bf16.mxu0 0
    %944 = vmatpush1.bf16.msra.mxu0 %v877
    %945 = vmatprep.subr.bf16.mxu0 0
    %946 = vmatpush1.bf16.msra.mxu0 %v878
    %947 = vmatprep.subr.bf16.mxu0 0
    %948 = vmatpush1.bf16.msra.mxu0 %v879
    %949 = vmatprep.subr.bf16.mxu0 0
    %950 = vmatpush1.bf16.msra.mxu0 %v880
    %951 = vmatprep.subr.bf16.mxu0 0
    %952 = vmatpush1.bf16.msra.mxu0 %v881
    %953 = vmatprep.subr.bf16.mxu0 0
    %954 = vmatpush1.bf16.msra.mxu0 %v882
    %955 = vmatprep.subr.bf16.mxu0 0
    %956 = vmatpush1.bf16.msra.mxu0 %v883
    %957 = vmatprep.subr.bf16.mxu0 0
    %958 = vmatpush1.bf16.msra.mxu0 %v884
    %959 = vmatprep.subr.bf16.mxu0 0
    %960 = vmatpush1.bf16.msra.mxu0 %v885
    %961 = vmatprep.subr.bf16.mxu0 0
    %962 = vmatpush1.bf16.msra.mxu0 %v886
    %963 = vmatprep.subr.bf16.mxu0 0
    %964 = vmatpush1.bf16.msra.mxu0 %v887
    %965 = vmatprep.subr.bf16.mxu0 0
    %966 = vmatpush1.bf16.msra.mxu0 %v888
    %967 = vmatprep.subr.bf16.mxu0 0
    %968 = vmatpush1.bf16.msra.mxu0 %v889
    %969 = vmatprep.subr.bf16.mxu0 0
    %970 = vmatpush1.bf16.msra.mxu0 %v890
    %971 = vmatprep.mubr.bf16.mxu0 %v676
    %972 = vmatmul.mubr.bf16.gmra.mrb[0].mxu0 %v675
    %v973 = vpop.f32.mrb[0].mxu0
    %v974 = vadd.f32 %v746, %v973
    %v975 = vpop.f32.mrb[0].mxu0
    %v976 = vpop.f32.mrb[0].mxu0
    %v977 = vadd.f32 %v746, %v976
    %v978 = vpop.f32.mrb[0].mxu0
    %979 = vdwg.mxu0
    %980 = vmatprep.subr.bf16.mxu0 0
    %981 = vmatpush1.bf16.msra.mxu0 %v891
    %982 = vmatprep.subr.bf16.mxu0 0
    %983 = vmatpush1.bf16.msra.mxu0 %v892
    %984 = vmatprep.subr.bf16.mxu0 0
    %985 = vmatpush1.bf16.msra.mxu0 %v893
    %986 = vmatprep.subr.bf16.mxu0 0
    %987 = vmatpush1.bf16.msra.mxu0 %v894
    %988 = vmatprep.subr.bf16.mxu0 0
    %989 = vmatpush1.bf16.msra.mxu0 %v895
    %990 = vmatprep.subr.bf16.mxu0 0
    %991 = vmatpush1.bf16.msra.mxu0 %v896
    %992 = vmatprep.subr.bf16.mxu0 0
    %993 = vmatpush1.bf16.msra.mxu0 %v897
    %994 = vmatprep.subr.bf16.mxu0 0
    %995 = vmatpush1.bf16.msra.mxu0 %v898
    %996 = vmatprep.subr.bf16.mxu0 0
    %997 = vmatpush1.bf16.msra.mxu0 %v899
    %998 = vmatprep.subr.bf16.mxu0 0
    %999 = vmatpush1.bf16.msra.mxu0 %v900
    %1000 = vmatprep.subr.bf16.mxu0 0
    %1001 = vmatpush1.bf16.msra.mxu0 %v901
    %1002 = vmatprep.subr.bf16.mxu0 0
    %1003 = vmatpush1.bf16.msra.mxu0 %v902
    %1004 = vmatprep.subr.bf16.mxu0 0
    %1005 = vmatpush1.bf16.msra.mxu0 %v903
    %1006 = vmatprep.subr.bf16.mxu0 0
    %1007 = vmatpush1.bf16.msra.mxu0 %v904
    %1008 = vmatprep.subr.bf16.mxu0 0
    %1009 = vmatpush1.bf16.msra.mxu0 %v905
    %1010 = vmatprep.subr.bf16.mxu0 0
    %1011 = vmatpush1.bf16.msra.mxu0 %v906
    %1012 = vmatprep.mubr.bf16.mxu0 %v678
    %1013 = vmatmul.mubr.bf16.gmra.mrb[0].mxu0 %v677
    %v1014 = vpop.f32.mrb[0].mxu0
    %v1015 = vadd.f32 %v974, %v1014
    %v1016 = vpop.f32.mrb[0].mxu0
    %v1017 = vpop.f32.mrb[0].mxu0
    %v1018 = vadd.f32 %v977, %v1017
    %v1019 = vpop.f32.mrb[0].mxu0
    %1020 = vdwg.mxu0
    %v1021 = vadd.f32 %v370, %v1015
    %v1022 = vadd.f32 %v371, %v1018
    %1023 = vadd.xlane.f32.xlu0 %v1021
    %v1024 = vpop.xlane.xlu0 %1023
    %1025 = vadd.xlane.f32.xlu0 %v1022
    %v1026 = vpop.xlane.xlu0 %1025
    %v1027 = vmul.f32 %v1024, %v341
    %v1028 = vmul.f32 %v1026, %v341
    %v1029 = vsub.f32 %v1021, %v1027
    %v1030 = vsub.f32 %v1022, %v1028
    %v1031 = vmul.f32 %v1029, %v1029
    %v1032 = vmul.f32 %v1030, %v1030
    %1033 = vadd.xlane.f32.xlu0 %v1031
    %v1034 = vpop.xlane.xlu0 %1033
    %1035 = vadd.xlane.f32.xlu0 %v1032
    %v1036 = vpop.xlane.xlu0 %1035
    %v1037 = vmul.f32 %v1034, %v341
    %v1038 = vmul.f32 %v1036, %v341
    %v1039 = vadd.f32 %v1037, 1e-05
    %v1040 = vadd.f32 %v1038, 1e-05
    %v1041 = vrsqrt.pop %v1039
    %v1042 = vrsqrt.pop %v1040
    %v1043 = vmul.f32 %v1029, %v1041
    %v1044 = vmul.f32 %v1030, %v1042
    %v1045 = vlaneseq
    %v1046 = vshrl.u32 %v1045, 7
    %v1047 = vsub.s32 1, %v1046
    %v1048 = vrot.slane %v130, %v1047
    %v1049 = vmul.f32 %v1043, %v1048
    %v1050 = vmul.f32 %v1044, %v1048
    %v1051 = vlaneseq
    %v1052 = vshrl.u32 %v1051, 7
    %v1053 = vsub.s32 3, %v1052
    %v1054 = vrot.slane %v130, %v1053
    %v1055 = vadd.f32 %v1049, %v1054
    %v1056 = vadd.f32 %v1050, %v1054
    %v1057 = vpack.c.bf16 %v1056, %v1055
    %s1058 = scalar_lea.vmem [#allocation2], 64
    %v1059 = vld [vmem:[%s1058] sm:$0xf]
    %v1060 = vld [vmem:[%s1058 + $0x4] sm:$0xf]
    %v1061 = vld [vmem:[%s1058 + $0x8] sm:$0xf]
    %v1062 = vld [vmem:[%s1058 + $0xc] sm:$0xf]
    %v1063 = vld [vmem:[%s1058 + $0x10] sm:$0xf]
    %v1064 = vld [vmem:[%s1058 + $0x14] sm:$0xf]
    %v1065 = vld [vmem:[%s1058 + $0x18] sm:$0xf]
    %v1066 = vld [vmem:[%s1058 + $0x1c] sm:$0xf]
    %v1067 = vld [vmem:[%s1058 + $0x20] sm:$0xf]
    %v1068 = vld [vmem:[%s1058 + $0x24] sm:$0xf]
    %v1069 = vld [vmem:[%s1058 + $0x28] sm:$0xf]
    %v1070 = vld [vmem:[%s1058 + $0x2c] sm:$0xf]
    %v1071 = vld [vmem:[%s1058 + $0x30] sm:$0xf]
    %v1072 = vld [vmem:[%s1058 + $0x34] sm:$0xf]
    %v1073 = vld [vmem:[%s1058 + $0x38] sm:$0xf]
    %v1074 = vld [vmem:[%s1058 + $0x3c] sm:$0xf]
    %v1091 = vunpack.c.l.b16 %v1059
    %v1092 = vunpack.c.l.b16 %v1060
    %v1093 = vunpack.c.l.b16 %v1061
    %v1094 = vunpack.c.l.b16 %v1062
    %v1095 = vunpack.c.l.b16 %v1063
    %v1096 = vunpack.c.l.b16 %v1064
    %v1097 = vunpack.c.l.b16 %v1065
    %v1098 = vunpack.c.l.b16 %v1066
    %v1099 = vunpack.c.l.b16 %v1067
    %v1100 = vunpack.c.l.b16 %v1068
    %v1101 = vunpack.c.l.b16 %v1069
    %v1102 = vunpack.c.l.b16 %v1070
    %v1103 = vunpack.c.l.b16 %v1071
    %v1104 = vunpack.c.l.b16 %v1072
    %v1105 = vunpack.c.l.b16 %v1073
    %v1106 = vunpack.c.l.b16 %v1074
    %v1107 = vpack.c.b16 %v1092, %v1091
    %v1108 = vpack.c.b16 %v1094, %v1093
    %v1109 = vpack.c.b16 %v1096, %v1095
    %v1110 = vpack.c.b16 %v1098, %v1097
    %v1111 = vpack.c.b16 %v1100, %v1099
    %v1112 = vpack.c.b16 %v1102, %v1101
    %v1113 = vpack.c.b16 %v1104, %v1103
    %v1114 = vpack.c.b16 %v1106, %v1105
    %1123 = vmatprep.subr.bf16.mxu0 0
    %1124 = vmatpush1.bf16.msra.mxu0 %v1107
    %1125 = vmatprep.subr.bf16.mxu0 0
    %1126 = vmatpush1.bf16.msra.mxu0 %v1108
    %1127 = vmatprep.subr.bf16.mxu0 0
    %1128 = vmatpush1.bf16.msra.mxu0 %v1109
    %1129 = vmatprep.subr.bf16.mxu0 0
    %1130 = vmatpush1.bf16.msra.mxu0 %v1110
    %1131 = vmatprep.subr.bf16.mxu0 0
    %1132 = vmatpush1.bf16.msra.mxu0 %v1111
    %1133 = vmatprep.subr.bf16.mxu0 0
    %1134 = vmatpush1.bf16.msra.mxu0 %v1112
    %1135 = vmatprep.subr.bf16.mxu0 0
    %1136 = vmatpush1.bf16.msra.mxu0 %v1113
    %1137 = vmatprep.subr.bf16.mxu0 0
    %1138 = vmatpush1.bf16.msra.mxu0 %v1114
    %1139 = vmatprep.subr.bf16.mxu0 0
    %1140 = vmatpush1.bf16.msra.mxu0 0
    %1141 = vmatprep.subr.bf16.mxu0 0
    %1142 = vmatpush1.bf16.msra.mxu0 0
    %1143 = vmatprep.subr.bf16.mxu0 0
    %1144 = vmatpush1.bf16.msra.mxu0 0
    %1145 = vmatprep.subr.bf16.mxu0 0
    %1146 = vmatpush1.bf16.msra.mxu0 0
    %1147 = vmatprep.subr.bf16.mxu0 0
    %1148 = vmatpush1.bf16.msra.mxu0 0
    %1149 = vmatprep.subr.bf16.mxu0 0
    %1150 = vmatpush1.bf16.msra.mxu0 0
    %1151 = vmatprep.subr.bf16.mxu0 0
    %1152 = vmatpush1.bf16.msra.mxu0 0
    %1153 = vmatprep.subr.bf16.mxu0 0
    %1154 = vmatpush1.bf16.msra.mxu0 0
    %1155 = vmatprep.mubr.bf16.mxu0 0
    %1156 = vmatmul.mubr.bf16.gmra.mrb[0].mxu0 %v1057
    %v1157 = vpop.f32.mrb[0].mxu0
    %v1158 = vadd.f32 0.0, %v1157
    %v1159 = vpop.f32.mrb[0].mxu0
    %v1160 = vpop.f32.mrb[0].mxu0
    %v1161 = vadd.f32 0.0, %v1160
    %v1162 = vpop.f32.mrb[0].mxu0
    %1163 = vdwg.mxu0
    %v1164 = vadd.f32 %v1055, %v1158
    %v1165 = vadd.f32 %v1056, %v1161
    %v1166 = vlaneseq
    %v1167 = vshrl.u32 %v1166, 7
    %v1168 = vsub.s32 2, %v1167
    %v1169 = vrot.slane %v129, %v1168
    %v1170 = vadd.f32 %v1164, %v1169
    %v1171 = vadd.f32 %v1165, %v1169
    %1172 = vadd.xlane.f32.xlu0 %v1170
    %v1173 = vpop.xlane.xlu0 %1172
    %1174 = vadd.xlane.f32.xlu0 %v1171
    %v1175 = vpop.xlane.xlu0 %1174
    %v1176 = vmul.f32 %v1173, %v341
    %v1177 = vmul.f32 %v1175, %v341
    %v1178 = vsub.f32 %v1170, %v1176
    %v1179 = vsub.f32 %v1171, %v1177
    %v1180 = vmul.f32 %v1178, %v1178
    %v1181 = vmul.f32 %v1179, %v1179
    %1182 = vadd.xlane.f32.xlu0 %v1180
    %v1183 = vpop.xlane.xlu0 %1182
    %1184 = vadd.xlane.f32.xlu0 %v1181
    %v1185 = vpop.xlane.xlu0 %1184
    %v1186 = vmul.f32 %v1183, %v341
    %v1187 = vmul.f32 %v1185, %v341
    %v1188 = vadd.f32 %v1186, 1e-05
    %v1189 = vadd.f32 %v1187, 1e-05
    %v1190 = vrsqrt.pop %v1188
    %v1191 = vrsqrt.pop %v1189
    %v1192 = vmul.f32 %v1178, %v1190
    %v1193 = vmul.f32 %v1179, %v1191
    %v1194 = vlaneseq
    %v1195 = vshrl.u32 %v1194, 7
    %v1196 = vsub.s32 6, %v1195
    %v1197 = vrot.slane %v129, %v1196
    %v1198 = vmul.f32 %v1192, %v1197
    %v1199 = vmul.f32 %v1193, %v1197
    %v1200 = vlaneseq
    %v1201 = vshrl.u32 %v1200, 7
    %v1202 = vsub.s32 0, %v1201
    %v1203 = vrot.slane %v130, %v1202
    %v1204 = vadd.f32 %v1198, %v1203
    %v1205 = vadd.f32 %v1199, %v1203
    %v1206 = vpack.c.bf16 %v1205, %v1204
    %s1207 = scalar_lea.vmem [#allocation4], 256
    %v1208 = vld [vmem:[%s1207] sm:$0xff]
    %v1209 = vld [vmem:[%s1207 + $0x8] sm:$0xff]
    %v1210 = vld [vmem:[%s1207 + $0x10] sm:$0xff]
    %v1211 = vld [vmem:[%s1207 + $0x18] sm:$0xff]
    %v1212 = vld [vmem:[%s1207 + $0x20] sm:$0xff]
    %v1213 = vld [vmem:[%s1207 + $0x28] sm:$0xff]
    %v1214 = vld [vmem:[%s1207 + $0x30] sm:$0xff]
    %v1215 = vld [vmem:[%s1207 + $0x38] sm:$0xff]
    %v1216 = vld [vmem:[%s1207 + $0x40] sm:$0xff]
    %v1217 = vld [vmem:[%s1207 + $0x48] sm:$0xff]
    %v1218 = vld [vmem:[%s1207 + $0x50] sm:$0xff]
    %v1219 = vld [vmem:[%s1207 + $0x58] sm:$0xff]
    %v1220 = vld [vmem:[%s1207 + $0x60] sm:$0xff]
    %v1221 = vld [vmem:[%s1207 + $0x68] sm:$0xff]
    %v1222 = vld [vmem:[%s1207 + $0x70] sm:$0xff]
    %v1223 = vld [vmem:[%s1207 + $0x78] sm:$0xff]
    %v1224 = vld [vmem:[%s1207 + $0x80] sm:$0xff]
    %v1225 = vld [vmem:[%s1207 + $0x88] sm:$0xff]
    %v1226 = vld [vmem:[%s1207 + $0x90] sm:$0xff]
    %v1227 = vld [vmem:[%s1207 + $0x98] sm:$0xff]
    %v1228 = vld [vmem:[%s1207 + $0xa0] sm:$0xff]
    %v1229 = vld [vmem:[%s1207 + $0xa8] sm:$0xff]
    %v1230 = vld [vmem:[%s1207 + $0xb0] sm:$0xff]
    %v1231 = vld [vmem:[%s1207 + $0xb8] sm:$0xff]
    %v1232 = vld [vmem:[%s1207 + $0xc0] sm:$0xff]
    %v1233 = vld [vmem:[%s1207 + $0xc8] sm:$0xff]
    %v1234 = vld [vmem:[%s1207 + $0xd0] sm:$0xff]
    %v1235 = vld [vmem:[%s1207 + $0xd8] sm:$0xff]
    %v1236 = vld [vmem:[%s1207 + $0xe0] sm:$0xff]
    %v1237 = vld [vmem:[%s1207 + $0xe8] sm:$0xff]
    %v1238 = vld [vmem:[%s1207 + $0xf0] sm:$0xff]
    %v1239 = vld [vmem:[%s1207 + $0xf8] sm:$0xff]
    %v1240 = vlaneseq
    %v1241 = vshrl.u32 %v1240, 7
    %v1242 = vsub.s32 1, %v1241
    %v1243 = vrot.slane %v131, %v1242
    %v1244 = vlaneseq
    %v1245 = vshrl.u32 %v1244, 7
    %v1246 = vsub.s32 1, %v1245
    %v1247 = vrot.slane %v132, %v1246
    %v1248 = vlaneseq
    %v1249 = vshrl.u32 %v1248, 7
    %v1250 = vsub.s32 1, %v1249
    %v1251 = vrot.slane %v133, %v1250
    %v1252 = vlaneseq
    %v1253 = vshrl.u32 %v1252, 7
    %v1254 = vsub.s32 1, %v1253
    %v1255 = vrot.slane %v134, %v1254
    %v1288 = vunpack.c.l.b16 %v1208
    %v1289 = vunpack.c.h.b16 %v1208
    %v1290 = vunpack.c.l.b16 %v1209
    %v1291 = vunpack.c.h.b16 %v1209
    %v1292 = vunpack.c.l.b16 %v1210
    %v1293 = vunpack.c.h.b16 %v1210
    %v1294 = vunpack.c.l.b16 %v1211
    %v1295 = vunpack.c.h.b16 %v1211
    %v1296 = vunpack.c.l.b16 %v1212
    %v1297 = vunpack.c.h.b16 %v1212
    %v1298 = vunpack.c.l.b16 %v1213
    %v1299 = vunpack.c.h.b16 %v1213
    %v1300 = vunpack.c.l.b16 %v1214
    %v1301 = vunpack.c.h.b16 %v1214
    %v1302 = vunpack.c.l.b16 %v1215
    %v1303 = vunpack.c.h.b16 %v1215
    %v1304 = vunpack.c.l.b16 %v1216
    %v1305 = vunpack.c.h.b16 %v1216
    %v1306 = vunpack.c.l.b16 %v1217
    %v1307 = vunpack.c.h.b16 %v1217
    %v1308 = vunpack.c.l.b16 %v1218
    %v1309 = vunpack.c.h.b16 %v1218
    %v1310 = vunpack.c.l.b16 %v1219
    %v1311 = vunpack.c.h.b16 %v1219
    %v1312 = vunpack.c.l.b16 %v1220
    %v1313 = vunpack.c.h.b16 %v1220
    %v1314 = vunpack.c.l.b16 %v1221
    %v1315 = vunpack.c.h.b16 %v1221
    %v1316 = vunpack.c.l.b16 %v1222
    %v1317 = vunpack.c.h.b16 %v1222
    %v1318 = vunpack.c.l.b16 %v1223
    %v1319 = vunpack.c.h.b16 %v1223
    %v1320 = vunpack.c.l.b16 %v1224
    %v1321 = vunpack.c.h.b16 %v1224
    %v1322 = vunpack.c.l.b16 %v1225
    %v1323 = vunpack.c.h.b16 %v1225
    %v1324 = vunpack.c.l.b16 %v1226
    %v1325 = vunpack.c.h.b16 %v1226
    %v1326 = vunpack.c.l.b16 %v1227
    %v1327 = vunpack.c.h.b16 %v1227
    %v1328 = vunpack.c.l.b16 %v1228
    %v1329 = vunpack.c.h.b16 %v1228
    %v1330 = vunpack.c.l.b16 %v1229
    %v1331 = vunpack.c.h.b16 %v1229
    %v1332 = vunpack.c.l.b16 %v1230
    %v1333 = vunpack.c.h.b16 %v1230
    %v1334 = vunpack.c.l.b16 %v1231
    %v1335 = vunpack.c.h.b16 %v1231
    %v1336 = vunpack.c.l.b16 %v1232
    %v1337 = vunpack.c.h.b16 %v1232
    %v1338 = vunpack.c.l.b16 %v1233
    %v1339 = vunpack.c.h.b16 %v1233
    %v1340 = vunpack.c.l.b16 %v1234
    %v1341 = vunpack.c.h.b16 %v1234
    %v1342 = vunpack.c.l.b16 %v1235
    %v1343 = vunpack.c.h.b16 %v1235
    %v1344 = vunpack.c.l.b16 %v1236
    %v1345 = vunpack.c.h.b16 %v1236
    %v1346 = vunpack.c.l.b16 %v1237
    %v1347 = vunpack.c.h.b16 %v1237
    %v1348 = vunpack.c.l.b16 %v1238
    %v1349 = vunpack.c.h.b16 %v1238
    %v1350 = vunpack.c.l.b16 %v1239
    %v1351 = vunpack.c.h.b16 %v1239
    %v1352 = vpack.c.b16 %v1292, %v1288
    %v1353 = vpack.c.b16 %v1293, %v1289
    %v1354 = vpack.c.b16 %v1294, %v1290
    %v1355 = vpack.c.b16 %v1295, %v1291
    %v1356 = vpack.c.b16 %v1300, %v1296
    %v1357 = vpack.c.b16 %v1301, %v1297
    %v1358 = vpack.c.b16 %v1302, %v1298
    %v1359 = vpack.c.b16 %v1303, %v1299
    %v1360 = vpack.c.b16 %v1308, %v1304
    %v1361 = vpack.c.b16 %v1309, %v1305
    %v1362 = vpack.c.b16 %v1310, %v1306
    %v1363 = vpack.c.b16 %v1311, %v1307
    %v1364 = vpack.c.b16 %v1316, %v1312
    %v1365 = vpack.c.b16 %v1317, %v1313
    %v1366 = vpack.c.b16 %v1318, %v1314
    %v1367 = vpack.c.b16 %v1319, %v1315
    %v1368 = vpack.c.b16 %v1324, %v1320
    %v1369 = vpack.c.b16 %v1325, %v1321
    %v1370 = vpack.c.b16 %v1326, %v1322
    %v1371 = vpack.c.b16 %v1327, %v1323
    %v1372 = vpack.c.b16 %v1332, %v1328
    %v1373 = vpack.c.b16 %v1333, %v1329
    %v1374 = vpack.c.b16 %v1334, %v1330
    %v1375 = vpack.c.b16 %v1335, %v1331
    %v1376 = vpack.c.b16 %v1340, %v1336
    %v1377 = vpack.c.b16 %v1341, %v1337
    %v1378 = vpack.c.b16 %v1342, %v1338
    %v1379 = vpack.c.b16 %v1343, %v1339
    %v1380 = vpack.c.b16 %v1348, %v1344
    %v1381 = vpack.c.b16 %v1349, %v1345
    %v1382 = vpack.c.b16 %v1350, %v1346
    %v1383 = vpack.c.b16 %v1351, %v1347
    %1416 = vmatprep.subr.bf16.mxu0 %v1353
    %1417 = vmatpush1.bf16.msra.mxu0 %v1352
    %1418 = vmatprep.subr.bf16.mxu0 %v1357
    %1419 = vmatpush1.bf16.msra.mxu0 %v1356
    %1420 = vmatprep.subr.bf16.mxu0 %v1361
    %1421 = vmatpush1.bf16.msra.mxu0 %v1360
    %1422 = vmatprep.subr.bf16.mxu0 %v1365
    %1423 = vmatpush1.bf16.msra.mxu0 %v1364
    %1424 = vmatprep.subr.bf16.mxu0 %v1369
    %1425 = vmatpush1.bf16.msra.mxu0 %v1368
    %1426 = vmatprep.subr.bf16.mxu0 %v1373
    %1427 = vmatpush1.bf16.msra.mxu0 %v1372
    %1428 = vmatprep.subr.bf16.mxu0 %v1377
    %1429 = vmatpush1.bf16.msra.mxu0 %v1376
    %1430 = vmatprep.subr.bf16.mxu0 %v1381
    %1431 = vmatpush1.bf16.msra.mxu0 %v1380
    %1432 = vmatprep.subr.bf16.mxu0 0
    %1433 = vmatpush1.bf16.msra.mxu0 0
    %1434 = vmatprep.subr.bf16.mxu0 0
    %1435 = vmatpush1.bf16.msra.mxu0 0
    %1436 = vmatprep.subr.bf16.mxu0 0
    %1437 = vmatpush1.bf16.msra.mxu0 0
    %1438 = vmatprep.subr.bf16.mxu0 0
    %1439 = vmatpush1.bf16.msra.mxu0 0
    %1440 = vmatprep.subr.bf16.mxu0 0
    %1441 = vmatpush1.bf16.msra.mxu0 0
    %1442 = vmatprep.subr.bf16.mxu0 0
    %1443 = vmatpush1.bf16.msra.mxu0 0
    %1444 = vmatprep.subr.bf16.mxu0 0
    %1445 = vmatpush1.bf16.msra.mxu0 0
    %1446 = vmatprep.subr.bf16.mxu0 0
    %1447 = vmatpush1.bf16.msra.mxu0 0
    %1448 = vmatprep.mubr.bf16.mxu0 0
    %1449 = vmatmul.mubr.bf16.gmra.mrb[0].mxu0 %v1206
    %v1450 = vpop.f32.mrb[0].mxu0
    %v1451 = vadd.f32 %v1243, %v1450
    %v1452 = vpop.f32.mrb[0].mxu0
    %v1453 = vadd.f32 %v1247, %v1452
    %v1454 = vpop.f32.mrb[0].mxu0
    %v1455 = vadd.f32 %v1243, %v1454
    %v1456 = vpop.f32.mrb[0].mxu0
    %v1457 = vadd.f32 %v1247, %v1456
    %1458 = vdwg.mxu0
    %1459 = vmatprep.subr.bf16.mxu0 %v1355
    %1460 = vmatpush1.bf16.msra.mxu0 %v1354
    %1461 = vmatprep.subr.bf16.mxu0 %v1359
    %1462 = vmatpush1.bf16.msra.mxu0 %v1358
    %1463 = vmatprep.subr.bf16.mxu0 %v1363
    %1464 = vmatpush1.bf16.msra.mxu0 %v1362
    %1465 = vmatprep.subr.bf16.mxu0 %v1367
    %1466 = vmatpush1.bf16.msra.mxu0 %v1366
    %1467 = vmatprep.subr.bf16.mxu0 %v1371
    %1468 = vmatpush1.bf16.msra.mxu0 %v1370
    %1469 = vmatprep.subr.bf16.mxu0 %v1375
    %1470 = vmatpush1.bf16.msra.mxu0 %v1374
    %1471 = vmatprep.subr.bf16.mxu0 %v1379
    %1472 = vmatpush1.bf16.msra.mxu0 %v1378
    %1473 = vmatprep.subr.bf16.mxu0 %v1383
    %1474 = vmatpush1.bf16.msra.mxu0 %v1382
    %1475 = vmatprep.subr.bf16.mxu0 0
    %1476 = vmatpush1.bf16.msra.mxu0 0
    %1477 = vmatprep.subr.bf16.mxu0 0
    %1478 = vmatpush1.bf16.msra.mxu0 0
    %1479 = vmatprep.subr.bf16.mxu0 0
    %1480 = vmatpush1.bf16.msra.mxu0 0
    %1481 = vmatprep.subr.bf16.mxu0 0
    %1482 = vmatpush1.bf16.msra.mxu0 0
    %1483 = vmatprep.subr.bf16.mxu0 0
    %1484 = vmatpush1.bf16.msra.mxu0 0
    %1485 = vmatprep.subr.bf16.mxu0 0
    %1486 = vmatpush1.bf16.msra.mxu0 0
    %1487 = vmatprep.subr.bf16.mxu0 0
    %1488 = vmatpush1.bf16.msra.mxu0 0
    %1489 = vmatprep.subr.bf16.mxu0 0
    %1490 = vmatpush1.bf16.msra.mxu0 0
    %1491 = vmatprep.mubr.bf16.mxu0 0
    %1492 = vmatmul.mubr.bf16.gmra.mrb[0].mxu0 %v1206
    %v1493 = vpop.f32.mrb[0].mxu0
    %v1494 = vadd.f32 %v1251, %v1493
    %v1495 = vpop.f32.mrb[0].mxu0
    %v1496 = vadd.f32 %v1255, %v1495
    %v1497 = vpop.f32.mrb[0].mxu0
    %v1498 = vadd.f32 %v1251, %v1497
    %v1499 = vpop.f32.mrb[0].mxu0
    %v1500 = vadd.f32 %v1255, %v1499
    %1501 = vdwg.mxu0
    %v1502 = vmax.f32 %v1451, 0.0
    %v1503 = vmax.f32 %v1453, 0.0
    %v1504 = vmax.f32 %v1494, 0.0
    %v1505 = vmax.f32 %v1496, 0.0
    %v1506 = vmax.f32 %v1455, 0.0
    %v1507 = vmax.f32 %v1457, 0.0
    %v1508 = vmax.f32 %v1498, 0.0
    %v1509 = vmax.f32 %v1500, 0.0
    %v1510 = vpack.c.bf16 %v1506, %v1502
    %v1511 = vpack.c.bf16 %v1507, %v1503
    %v1512 = vpack.c.bf16 %v1508, %v1504
    %v1513 = vpack.c.bf16 %v1509, %v1505
    %s1514 = scalar_lea.vmem [#allocation6], 256
    %v1515 = vld [vmem:[%s1514] sm:$0xf]
    %v1516 = vld [vmem:[%s1514 + $0x4] sm:$0xf]
    %v1517 = vld [vmem:[%s1514 + $0x8] sm:$0xf]
    %v1518 = vld [vmem:[%s1514 + $0xc] sm:$0xf]
    %v1519 = vld [vmem:[%s1514 + $0x10] sm:$0xf]
    %v1520 = vld [vmem:[%s1514 + $0x14] sm:$0xf]
    %v1521 = vld [vmem:[%s1514 + $0x18] sm:$0xf]
    %v1522 = vld [vmem:[%s1514 + $0x1c] sm:$0xf]
    %v1523 = vld [vmem:[%s1514 + $0x20] sm:$0xf]
    %v1524 = vld [vmem:[%s1514 + $0x24] sm:$0xf]
    %v1525 = vld [vmem:[%s1514 + $0x28] sm:$0xf]
    %v1526 = vld [vmem:[%s1514 + $0x2c] sm:$0xf]
    %v1527 = vld [vmem:[%s1514 + $0x30] sm:$0xf]
    %v1528 = vld [vmem:[%s1514 + $0x34] sm:$0xf]
    %v1529 = vld [vmem:[%s1514 + $0x38] sm:$0xf]
    %v1530 = vld [vmem:[%s1514 + $0x3c] sm:$0xf]
    %v1531 = vld [vmem:[%s1514 + $0x40] sm:$0xf]
    %v1532 = vld [vmem:[%s1514 + $0x44] sm:$0xf]
    %v1533 = vld [vmem:[%s1514 + $0x48] sm:$0xf]
    %v1534 = vld [vmem:[%s1514 + $0x4c] sm:$0xf]
    %v1535 = vld [vmem:[%s1514 + $0x50] sm:$0xf]
    %v1536 = vld [vmem:[%s1514 + $0x54] sm:$0xf]
    %v1537 = vld [vmem:[%s1514 + $0x58] sm:$0xf]
    %v1538 = vld [vmem:[%s1514 + $0x5c] sm:$0xf]
    %v1539 = vld [vmem:[%s1514 + $0x60] sm:$0xf]
    %v1540 = vld [vmem:[%s1514 + $0x64] sm:$0xf]
    %v1541 = vld [vmem:[%s1514 + $0x68] sm:$0xf]
    %v1542 = vld [vmem:[%s1514 + $0x6c] sm:$0xf]
    %v1543 = vld [vmem:[%s1514 + $0x70] sm:$0xf]
    %v1544 = vld [vmem:[%s1514 + $0x74] sm:$0xf]
    %v1545 = vld [vmem:[%s1514 + $0x78] sm:$0xf]
    %v1546 = vld [vmem:[%s1514 + $0x7c] sm:$0xf]
    %v1547 = vld [vmem:[%s1514 + $0x80] sm:$0xf]
    %v1548 = vld [vmem:[%s1514 + $0x84] sm:$0xf]
    %v1549 = vld [vmem:[%s1514 + $0x88] sm:$0xf]
    %v1550 = vld [vmem:[%s1514 + $0x8c] sm:$0xf]
    %v1551 = vld [vmem:[%s1514 + $0x90] sm:$0xf]
    %v1552 = vld [vmem:[%s1514 + $0x94] sm:$0xf]
    %v1553 = vld [vmem:[%s1514 + $0x98] sm:$0xf]
    %v1554 = vld [vmem:[%s1514 + $0x9c] sm:$0xf]
    %v1555 = vld [vmem:[%s1514 + $0xa0] sm:$0xf]
    %v1556 = vld [vmem:[%s1514 + $0xa4] sm:$0xf]
    %v1557 = vld [vmem:[%s1514 + $0xa8] sm:$0xf]
    %v1558 = vld [vmem:[%s1514 + $0xac] sm:$0xf]
    %v1559 = vld [vmem:[%s1514 + $0xb0] sm:$0xf]
    %v1560 = vld [vmem:[%s1514 + $0xb4] sm:$0xf]
    %v1561 = vld [vmem:[%s1514 + $0xb8] sm:$0xf]
    %v1562 = vld [vmem:[%s1514 + $0xbc] sm:$0xf]
    %v1563 = vld [vmem:[%s1514 + $0xc0] sm:$0xf]
    %v1564 = vld [vmem:[%s1514 + $0xc4] sm:$0xf]
    %v1565 = vld [vmem:[%s1514 + $0xc8] sm:$0xf]
    %v1566 = vld [vmem:[%s1514 + $0xcc] sm:$0xf]
    %v1567 = vld [vmem:[%s1514 + $0xd0] sm:$0xf]
    %v1568 = vld [vmem:[%s1514 + $0xd4] sm:$0xf]
    %v1569 = vld [vmem:[%s1514 + $0xd8] sm:$0xf]
    %v1570 = vld [vmem:[%s1514 + $0xdc] sm:$0xf]
    %v1571 = vld [vmem:[%s1514 + $0xe0] sm:$0xf]
    %v1572 = vld [vmem:[%s1514 + $0xe4] sm:$0xf]
    %v1573 = vld [vmem:[%s1514 + $0xe8] sm:$0xf]
    %v1574 = vld [vmem:[%s1514 + $0xec] sm:$0xf]
    %v1575 = vld [vmem:[%s1514 + $0xf0] sm:$0xf]
    %v1576 = vld [vmem:[%s1514 + $0xf4] sm:$0xf]
    %v1577 = vld [vmem:[%s1514 + $0xf8] sm:$0xf]
    %v1578 = vld [vmem:[%s1514 + $0xfc] sm:$0xf]
    %v1579 = vlaneseq
    %v1580 = vshrl.u32 %v1579, 7
    %v1581 = vsub.s32 4, %v1580
    %v1582 = vrot.slane %v129, %v1581
    %v1647 = vunpack.c.l.b16 %v1515
    %v1648 = vunpack.c.l.b16 %v1516
    %v1649 = vunpack.c.l.b16 %v1517
    %v1650 = vunpack.c.l.b16 %v1518
    %v1651 = vunpack.c.l.b16 %v1519
    %v1652 = vunpack.c.l.b16 %v1520
    %v1653 = vunpack.c.l.b16 %v1521
    %v1654 = vunpack.c.l.b16 %v1522
    %v1655 = vunpack.c.l.b16 %v1523
    %v1656 = vunpack.c.l.b16 %v1524
    %v1657 = vunpack.c.l.b16 %v1525
    %v1658 = vunpack.c.l.b16 %v1526
    %v1659 = vunpack.c.l.b16 %v1527
    %v1660 = vunpack.c.l.b16 %v1528
    %v1661 = vunpack.c.l.b16 %v1529
    %v1662 = vunpack.c.l.b16 %v1530
    %v1663 = vunpack.c.l.b16 %v1531
    %v1664 = vunpack.c.l.b16 %v1532
    %v1665 = vunpack.c.l.b16 %v1533
    %v1666 = vunpack.c.l.b16 %v1534
    %v1667 = vunpack.c.l.b16 %v1535
    %v1668 = vunpack.c.l.b16 %v1536
    %v1669 = vunpack.c.l.b16 %v1537
    %v1670 = vunpack.c.l.b16 %v1538
    %v1671 = vunpack.c.l.b16 %v1539
    %v1672 = vunpack.c.l.b16 %v1540
    %v1673 = vunpack.c.l.b16 %v1541
    %v1674 = vunpack.c.l.b16 %v1542
    %v1675 = vunpack.c.l.b16 %v1543
    %v1676 = vunpack.c.l.b16 %v1544
    %v1677 = vunpack.c.l.b16 %v1545
    %v1678 = vunpack.c.l.b16 %v1546
    %v1679 = vunpack.c.l.b16 %v1547
    %v1680 = vunpack.c.l.b16 %v1548
    %v1681 = vunpack.c.l.b16 %v1549
    %v1682 = vunpack.c.l.b16 %v1550
    %v1683 = vunpack.c.l.b16 %v1551
    %v1684 = vunpack.c.l.b16 %v1552
    %v1685 = vunpack.c.l.b16 %v1553
    %v1686 = vunpack.c.l.b16 %v1554
    %v1687 = vunpack.c.l.b16 %v1555
    %v1688 = vunpack.c.l.b16 %v1556
    %v1689 = vunpack.c.l.b16 %v1557
    %v1690 = vunpack.c.l.b16 %v1558
    %v1691 = vunpack.c.l.b16 %v1559
    %v1692 = vunpack.c.l.b16 %v1560
    %v1693 = vunpack.c.l.b16 %v1561
    %v1694 = vunpack.c.l.b16 %v1562
    %v1695 = vunpack.c.l.b16 %v1563
    %v1696 = vunpack.c.l.b16 %v1564
    %v1697 = vunpack.c.l.b16 %v1565
    %v1698 = vunpack.c.l.b16 %v1566
    %v1699 = vunpack.c.l.b16 %v1567
    %v1700 = vunpack.c.l.b16 %v1568
    %v1701 = vunpack.c.l.b16 %v1569
    %v1702 = vunpack.c.l.b16 %v1570
    %v1703 = vunpack.c.l.b16 %v1571
    %v1704 = vunpack.c.l.b16 %v1572
    %v1705 = vunpack.c.l.b16 %v1573
    %v1706 = vunpack.c.l.b16 %v1574
    %v1707 = vunpack.c.l.b16 %v1575
    %v1708 = vunpack.c.l.b16 %v1576
    %v1709 = vunpack.c.l.b16 %v1577
    %v1710 = vunpack.c.l.b16 %v1578
    %v1711 = vpack.c.b16 %v1648, %v1647
    %v1712 = vpack.c.b16 %v1650, %v1649
    %v1713 = vpack.c.b16 %v1652, %v1651
    %v1714 = vpack.c.b16 %v1654, %v1653
    %v1715 = vpack.c.b16 %v1656, %v1655
    %v1716 = vpack.c.b16 %v1658, %v1657
    %v1717 = vpack.c.b16 %v1660, %v1659
    %v1718 = vpack.c.b16 %v1662, %v1661
    %v1719 = vpack.c.b16 %v1664, %v1663
    %v1720 = vpack.c.b16 %v1666, %v1665
    %v1721 = vpack.c.b16 %v1668, %v1667
    %v1722 = vpack.c.b16 %v1670, %v1669
    %v1723 = vpack.c.b16 %v1672, %v1671
    %v1724 = vpack.c.b16 %v1674, %v1673
    %v1725 = vpack.c.b16 %v1676, %v1675
    %v1726 = vpack.c.b16 %v1678, %v1677
    %v1727 = vpack.c.b16 %v1680, %v1679
    %v1728 = vpack.c.b16 %v1682, %v1681
    %v1729 = vpack.c.b16 %v1684, %v1683
    %v1730 = vpack.c.b16 %v1686, %v1685
    %v1731 = vpack.c.b16 %v1688, %v1687
    %v1732 = vpack.c.b16 %v1690, %v1689
    %v1733 = vpack.c.b16 %v1692, %v1691
    %v1734 = vpack.c.b16 %v1694, %v1693
    %v1735 = vpack.c.b16 %v1696, %v1695
    %v1736 = vpack.c.b16 %v1698, %v1697
    %v1737 = vpack.c.b16 %v1700, %v1699
    %v1738 = vpack.c.b16 %v1702, %v1701
    %v1739 = vpack.c.b16 %v1704, %v1703
    %v1740 = vpack.c.b16 %v1706, %v1705
    %v1741 = vpack.c.b16 %v1708, %v1707
    %v1742 = vpack.c.b16 %v1710, %v1709
    %1775 = vmatprep.subr.bf16.mxu0 0
    %1776 = vmatpush1.bf16.msra.mxu0 %v1711
    %1777 = vmatprep.subr.bf16.mxu0 0
    %1778 = vmatpush1.bf16.msra.mxu0 %v1712
    %1779 = vmatprep.subr.bf16.mxu0 0
    %1780 = vmatpush1.bf16.msra.mxu0 %v1713
    %1781 = vmatprep.subr.bf16.mxu0 0
    %1782 = vmatpush1.bf16.msra.mxu0 %v1714
    %1783 = vmatprep.subr.bf16.mxu0 0
    %1784 = vmatpush1.bf16.msra.mxu0 %v1715
    %1785 = vmatprep.subr.bf16.mxu0 0
    %1786 = vmatpush1.bf16.msra.mxu0 %v1716
    %1787 = vmatprep.subr.bf16.mxu0 0
    %1788 = vmatpush1.bf16.msra.mxu0 %v1717
    %1789 = vmatprep.subr.bf16.mxu0 0
    %1790 = vmatpush1.bf16.msra.mxu0 %v1718
    %1791 = vmatprep.subr.bf16.mxu0 0
    %1792 = vmatpush1.bf16.msra.mxu0 %v1719
    %1793 = vmatprep.subr.bf16.mxu0 0
    %1794 = vmatpush1.bf16.msra.mxu0 %v1720
    %1795 = vmatprep.subr.bf16.mxu0 0
    %1796 = vmatpush1.bf16.msra.mxu0 %v1721
    %1797 = vmatprep.subr.bf16.mxu0 0
    %1798 = vmatpush1.bf16.msra.mxu0 %v1722
    %1799 = vmatprep.subr.bf16.mxu0 0
    %1800 = vmatpush1.bf16.msra.mxu0 %v1723
    %1801 = vmatprep.subr.bf16.mxu0 0
    %1802 = vmatpush1.bf16.msra.mxu0 %v1724
    %1803 = vmatprep.subr.bf16.mxu0 0
    %1804 = vmatpush1.bf16.msra.mxu0 %v1725
    %1805 = vmatprep.subr.bf16.mxu0 0
    %1806 = vmatpush1.bf16.msra.mxu0 %v1726
    %1807 = vmatprep.mubr.bf16.mxu0 %v1511
    %1808 = vmatmul.mubr.bf16.gmra.mrb[0].mxu0 %v1510
    %v1809 = vpop.f32.mrb[0].mxu0
    %v1810 = vadd.f32 %v1582, %v1809
    %v1811 = vpop.f32.mrb[0].mxu0
    %v1812 = vpop.f32.mrb[0].mxu0
    %v1813 = vadd.f32 %v1582, %v1812
    %v1814 = vpop.f32.mrb[0].mxu0
    %1815 = vdwg.mxu0
    %1816 = vmatprep.subr.bf16.mxu0 0
    %1817 = vmatpush1.bf16.msra.mxu0 %v1727
    %1818 = vmatprep.subr.bf16.mxu0 0
    %1819 = vmatpush1.bf16.msra.mxu0 %v1728
    %1820 = vmatprep.subr.bf16.mxu0 0
    %1821 = vmatpush1.bf16.msra.mxu0 %v1729
    %1822 = vmatprep.subr.bf16.mxu0 0
    %1823 = vmatpush1.bf16.msra.mxu0 %v1730
    %1824 = vmatprep.subr.bf16.mxu0 0
    %1825 = vmatpush1.bf16.msra.mxu0 %v1731
    %1826 = vmatprep.subr.bf16.mxu0 0
    %1827 = vmatpush1.bf16.msra.mxu0 %v1732
    %1828 = vmatprep.subr.bf16.mxu0 0
    %1829 = vmatpush1.bf16.msra.mxu0 %v1733
    %1830 = vmatprep.subr.bf16.mxu0 0
    %1831 = vmatpush1.bf16.msra.mxu0 %v1734
    %1832 = vmatprep.subr.bf16.mxu0 0
    %1833 = vmatpush1.bf16.msra.mxu0 %v1735
    %1834 = vmatprep.subr.bf16.mxu0 0
    %1835 = vmatpush1.bf16.msra.mxu0 %v1736
    %1836 = vmatprep.subr.bf16.mxu0 0
    %1837 = vmatpush1.bf16.msra.mxu0 %v1737
    %1838 = vmatprep.subr.bf16.mxu0 0
    %1839 = vmatpush1.bf16.msra.mxu0 %v1738
    %1840 = vmatprep.subr.bf16.mxu0 0
    %1841 = vmatpush1.bf16.msra.mxu0 %v1739
    %1842 = vmatprep.subr.bf16.mxu0 0
    %1843 = vmatpush1.bf16.msra.mxu0 %v1740
    %1844 = vmatprep.subr.bf16.mxu0 0
    %1845 = vmatpush1.bf16.msra.mxu0 %v1741
    %1846 = vmatprep.subr.bf16.mxu0 0
    %1847 = vmatpush1.bf16.msra.mxu0 %v1742
    %1848 = vmatprep.mubr.bf16.mxu0 %v1513
    %1849 = vmatmul.mubr.bf16.gmra.mrb[0].mxu0 %v1512
    %v1850 = vpop.f32.mrb[0].mxu0
    %v1851 = vadd.f32 %v1810, %v1850
    %v1852 = vpop.f32.mrb[0].mxu0
    %v1853 = vpop.f32.mrb[0].mxu0
    %v1854 = vadd.f32 %v1813, %v1853
    %v1855 = vpop.f32.mrb[0].mxu0
    %1856 = vdwg.mxu0
    %v1857 = vadd.f32 %v1204, %v1851
    %v1858 = vadd.f32 %v1205, %v1854
    %1859 = vadd.xlane.f32.xlu0 %v1857
    %v1860 = vpop.xlane.xlu0 %1859
    %1861 = vadd.xlane.f32.xlu0 %v1858
    %v1862 = vpop.xlane.xlu0 %1861
    %v1863 = vmul.f32 %v1860, %v341
    %v1864 = vmul.f32 %v1862, %v341
    %v1865 = vsub.f32 %v1857, %v1863
    %v1866 = vsub.f32 %v1858, %v1864
    %v1867 = vmul.f32 %v1865, %v1865
    %v1868 = vmul.f32 %v1866, %v1866
    %1869 = vadd.xlane.f32.xlu0 %v1867
    %v1870 = vpop.xlane.xlu0 %1869
    %1871 = vadd.xlane.f32.xlu0 %v1868
    %v1872 = vpop.xlane.xlu0 %1871
    %v1873 = vmul.f32 %v1870, %v341
    %v1874 = vmul.f32 %v1872, %v341
    %v1875 = vadd.f32 %v1873, 1e-05
    %v1876 = vadd.f32 %v1874, 1e-05
    %v1877 = vrsqrt.pop %v1875
    %v1878 = vrsqrt.pop %v1876
    %v1879 = vmul.f32 %v1865, %v1877
    %v1880 = vmul.f32 %v1866, %v1878
    %v1881 = vlaneseq
    %v1882 = vshrl.u32 %v1881, 7
    %v1883 = vsub.s32 2, %v1882
    %v1884 = vrot.slane %v130, %v1883
    %v1885 = vmul.f32 %v1879, %v1884
    %v1886 = vmul.f32 %v1880, %v1884
    %v1887 = vlaneseq
    %v1888 = vshrl.u32 %v1887, 7
    %v1889 = vsub.s32 4, %v1888
    %v1890 = vrot.slane %v130, %v1889
    %v1891 = vadd.f32 %v1885, %v1890
    %v1892 = vadd.f32 %v1886, %v1890
    %v1893 = vpack.c.bf16 %v1892, %v1891
    %v1894 = vld [vmem:[#allocation7] sm:$0xff]
    %v1895 = vld [vmem:[#allocation7 + $0x8] sm:$0xff]
    %v1896 = vld [vmem:[#allocation7 + $0x10] sm:$0xff]
    %v1897 = vld [vmem:[#allocation7 + $0x18] sm:$0xff]
    %v1898 = vld [vmem:[#allocation7 + $0x20] sm:$0xff]
    %v1899 = vld [vmem:[#allocation7 + $0x28] sm:$0xff]
    %v1900 = vld [vmem:[#allocation7 + $0x30] sm:$0xff]
    %v1901 = vld [vmem:[#allocation7 + $0x38] sm:$0xff]
    %v1902 = vld [vmem:[#allocation7 + $0x40] sm:$0xff]
    %v1903 = vld [vmem:[#allocation7 + $0x48] sm:$0xff]
    %v1904 = vld [vmem:[#allocation7 + $0x50] sm:$0xff]
    %v1905 = vld [vmem:[#allocation7 + $0x58] sm:$0xff]
    %v1906 = vld [vmem:[#allocation7 + $0x60] sm:$0xff]
    %v1907 = vld [vmem:[#allocation7 + $0x68] sm:$0xff]
    %v1908 = vld [vmem:[#allocation7 + $0x70] sm:$0xff]
    %v1909 = vld [vmem:[#allocation7 + $0x78] sm:$0xff]
    %v1910 = vld [vmem:[#allocation7 + $0x80] sm:$0xff]
    %v1911 = vld [vmem:[#allocation7 + $0x88] sm:$0xff]
    %v1912 = vld [vmem:[#allocation7 + $0x90] sm:$0xff]
    %v1913 = vld [vmem:[#allocation7 + $0x98] sm:$0xff]
    %v1914 = vld [vmem:[#allocation7 + $0xa0] sm:$0xff]
    %v1915 = vld [vmem:[#allocation7 + $0xa8] sm:$0xff]
    %v1916 = vld [vmem:[#allocation7 + $0xb0] sm:$0xff]
    %v1917 = vld [vmem:[#allocation7 + $0xb8] sm:$0xff]
    %v1918 = vld [vmem:[#allocation7 + $0xc0] sm:$0xff]
    %v1919 = vld [vmem:[#allocation7 + $0xc8] sm:$0xff]
    %v1920 = vld [vmem:[#allocation7 + $0xd0] sm:$0xff]
    %v1921 = vld [vmem:[#allocation7 + $0xd8] sm:$0xff]
    %v1922 = vld [vmem:[#allocation7 + $0xe0] sm:$0xff]
    %v1923 = vld [vmem:[#allocation7 + $0xe8] sm:$0xff]
    %v1924 = vld [vmem:[#allocation7 + $0xf0] sm:$0xff]
    %v1925 = vld [vmem:[#allocation7 + $0xf8] sm:$0xff]
    %v1926 = vlaneseq
    %v1927 = vshrl.u32 %v1926, 7
    %v1928 = vsub.s32 2, %v1927
    %v1929 = vrot.slane %v131, %v1928
    %v1930 = vlaneseq
    %v1931 = vshrl.u32 %v1930, 7
    %v1932 = vsub.s32 2, %v1931
    %v1933 = vrot.slane %v132, %v1932
    %v1934 = vlaneseq
    %v1935 = vshrl.u32 %v1934, 7
    %v1936 = vsub.s32 2, %v1935
    %v1937 = vrot.slane %v133, %v1936
    %v1938 = vlaneseq
    %v1939 = vshrl.u32 %v1938, 7
    %v1940 = vsub.s32 2, %v1939
    %v1941 = vrot.slane %v134, %v1940
    %v1974 = vunpack.c.l.b16 %v1894
    %v1975 = vunpack.c.h.b16 %v1894
    %v1976 = vunpack.c.l.b16 %v1895
    %v1977 = vunpack.c.h.b16 %v1895
    %v1978 = vunpack.c.l.b16 %v1896
    %v1979 = vunpack.c.h.b16 %v1896
    %v1980 = vunpack.c.l.b16 %v1897
    %v1981 = vunpack.c.h.b16 %v1897
    %v1982 = vunpack.c.l.b16 %v1898
    %v1983 = vunpack.c.h.b16 %v1898
    %v1984 = vunpack.c.l.b16 %v1899
    %v1985 = vunpack.c.h.b16 %v1899
    %v1986 = vunpack.c.l.b16 %v1900
    %v1987 = vunpack.c.h.b16 %v1900
    %v1988 = vunpack.c.l.b16 %v1901
    %v1989 = vunpack.c.h.b16 %v1901
    %v1990 = vunpack.c.l.b16 %v1902
    %v1991 = vunpack.c.h.b16 %v1902
    %v1992 = vunpack.c.l.b16 %v1903
    %v1993 = vunpack.c.h.b16 %v1903
    %v1994 = vunpack.c.l.b16 %v1904
    %v1995 = vunpack.c.h.b16 %v1904
    %v1996 = vunpack.c.l.b16 %v1905
    %v1997 = vunpack.c.h.b16 %v1905
    %v1998 = vunpack.c.l.b16 %v1906
    %v1999 = vunpack.c.h.b16 %v1906
    %v2000 = vunpack.c.l.b16 %v1907
    %v2001 = vunpack.c.h.b16 %v1907
    %v2002 = vunpack.c.l.b16 %v1908
    %v2003 = vunpack.c.h.b16 %v1908
    %v2004 = vunpack.c.l.b16 %v1909
    %v2005 = vunpack.c.h.b16 %v1909
    %v2006 = vunpack.c.l.b16 %v1910
    %v2007 = vunpack.c.h.b16 %v1910
    %v2008 = vunpack.c.l.b16 %v1911
    %v2009 = vunpack.c.h.b16 %v1911
    %v2010 = vunpack.c.l.b16 %v1912
    %v2011 = vunpack.c.h.b16 %v1912
    %v2012 = vunpack.c.l.b16 %v1913
    %v2013 = vunpack.c.h.b16 %v1913
    %v2014 = vunpack.c.l.b16 %v1914
    %v2015 = vunpack.c.h.b16 %v1914
    %v2016 = vunpack.c.l.b16 %v1915
    %v2017 = vunpack.c.h.b16 %v1915
    %v2018 = vunpack.c.l.b16 %v1916
    %v2019 = vunpack.c.h.b16 %v1916
    %v2020 = vunpack.c.l.b16 %v1917
    %v2021 = vunpack.c.h.b16 %v1917
    %v2022 = vunpack.c.l.b16 %v1918
    %v2023 = vunpack.c.h.b16 %v1918
    %v2024 = vunpack.c.l.b16 %v1919
    %v2025 = vunpack.c.h.b16 %v1919
    %v2026 = vunpack.c.l.b16 %v1920
    %v2027 = vunpack.c.h.b16 %v1920
    %v2028 = vunpack.c.l.b16 %v1921
    %v2029 = vunpack.c.h.b16 %v1921
    %v2030 = vunpack.c.l.b16 %v1922
    %v2031 = vunpack.c.h.b16 %v1922
    %v2032 = vunpack.c.l.b16 %v1923
    %v2033 = vunpack.c.h.b16 %v1923
    %v2034 = vunpack.c.l.b16 %v1924
    %v2035 = vunpack.c.h.b16 %v1924
    %v2036 = vunpack.c.l.b16 %v1925
    %v2037 = vunpack.c.h.b16 %v1925
    %v2038 = vpack.c.b16 %v1978, %v1974
    %v2039 = vpack.c.b16 %v1979, %v1975
    %v2040 = vpack.c.b16 %v1980, %v1976
    %v2041 = vpack.c.b16 %v1981, %v1977
    %v2042 = vpack.c.b16 %v1986, %v1982
    %v2043 = vpack.c.b16 %v1987, %v1983
    %v2044 = vpack.c.b16 %v1988, %v1984
    %v2045 = vpack.c.b16 %v1989, %v1985
    %v2046 = vpack.c.b16 %v1994, %v1990
    %v2047 = vpack.c.b16 %v1995, %v1991
    %v2048 = vpack.c.b16 %v1996, %v1992
    %v2049 = vpack.c.b16 %v1997, %v1993
    %v2050 = vpack.c.b16 %v2002, %v1998
    %v2051 = vpack.c.b16 %v2003, %v1999
    %v2052 = vpack.c.b16 %v2004, %v2000
    %v2053 = vpack.c.b16 %v2005, %v2001
    %v2054 = vpack.c.b16 %v2010, %v2006
    %v2055 = vpack.c.b16 %v2011, %v2007
    %v2056 = vpack.c.b16 %v2012, %v2008
    %v2057 = vpack.c.b16 %v2013, %v2009
    %v2058 = vpack.c.b16 %v2018, %v2014
    %v2059 = vpack.c.b16 %v2019, %v2015
    %v2060 = vpack.c.b16 %v2020, %v2016
    %v2061 = vpack.c.b16 %v2021, %v2017
    %v2062 = vpack.c.b16 %v2026, %v2022
    %v2063 = vpack.c.b16 %v2027, %v2023
    %v2064 = vpack.c.b16 %v2028, %v2024
    %v2065 = vpack.c.b16 %v2029, %v2025
    %v2066 = vpack.c.b16 %v2034, %v2030
    %v2067 = vpack.c.b16 %v2035, %v2031
    %v2068 = vpack.c.b16 %v2036, %v2032
    %v2069 = vpack.c.b16 %v2037, %v2033
    %2102 = vmatprep.subr.bf16.mxu0 %v2039
    %2103 = vmatpush1.bf16.msra.mxu0 %v2038
    %2104 = vmatprep.subr.bf16.mxu0 %v2043
    %2105 = vmatpush1.bf16.msra.mxu0 %v2042
    %2106 = vmatprep.subr.bf16.mxu0 %v2047
    %2107 = vmatpush1.bf16.msra.mxu0 %v2046
    %2108 = vmatprep.subr.bf16.mxu0 %v2051
    %2109 = vmatpush1.bf16.msra.mxu0 %v2050
    %2110 = vmatprep.subr.bf16.mxu0 %v2055
    %2111 = vmatpush1.bf16.msra.mxu0 %v2054
    %2112 = vmatprep.subr.bf16.mxu0 %v2059
    %2113 = vmatpush1.bf16.msra.mxu0 %v2058
    %2114 = vmatprep.subr.bf16.mxu0 %v2063
    %2115 = vmatpush1.bf16.msra.mxu0 %v2062
    %2116 = vmatprep.subr.bf16.mxu0 %v2067
    %2117 = vmatpush1.bf16.msra.mxu0 %v2066
    %2118 = vmatprep.subr.bf16.mxu0 0
    %2119 = vmatpush1.bf16.msra.mxu0 0
    %2120 = vmatprep.subr.bf16.mxu0 0
    %2121 = vmatpush1.bf16.msra.mxu0 0
    %2122 = vmatprep.subr.bf16.mxu0 0
    %2123 = vmatpush1.bf16.msra.mxu0 0
    %2124 = vmatprep.subr.bf16.mxu0 0
    %2125 = vmatpush1.bf16.msra.mxu0 0
    %2126 = vmatprep.subr.bf16.mxu0 0
    %2127 = vmatpush1.bf16.msra.mxu0 0
    %2128 = vmatprep.subr.bf16.mxu0 0
    %2129 = vmatpush1.bf16.msra.mxu0 0
    %2130 = vmatprep.subr.bf16.mxu0 0
    %2131 = vmatpush1.bf16.msra.mxu0 0
    %2132 = vmatprep.subr.bf16.mxu0 0
    %2133 = vmatpush1.bf16.msra.mxu0 0
    %2134 = vmatprep.mubr.bf16.mxu0 0
    %2135 = vmatmul.mubr.bf16.gmra.mrb[0].mxu0 %v1893
    %v2136 = vpop.f32.mrb[0].mxu0
    %v2137 = vadd.f32 %v1929, %v2136
    %v2138 = vpop.f32.mrb[0].mxu0
    %v2139 = vadd.f32 %v1933, %v2138
    %v2140 = vpop.f32.mrb[0].mxu0
    %v2141 = vadd.f32 %v1929, %v2140
    %v2142 = vpop.f32.mrb[0].mxu0
    %v2143 = vadd.f32 %v1933, %v2142
    %2144 = vdwg.mxu0
    %2145 = vmatprep.subr.bf16.mxu0 %v2041
    %2146 = vmatpush1.bf16.msra.mxu0 %v2040
    %2147 = vmatprep.subr.bf16.mxu0 %v2045
    %2148 = vmatpush1.bf16.msra.mxu0 %v2044
    %2149 = vmatprep.subr.bf16.mxu0 %v2049
    %2150 = vmatpush1.bf16.msra.mxu0 %v2048
    %2151 = vmatprep.subr.bf16.mxu0 %v2053
    %2152 = vmatpush1.bf16.msra.mxu0 %v2052
    %2153 = vmatprep.subr.bf16.mxu0 %v2057
    %2154 = vmatpush1.bf16.msra.mxu0 %v2056
    %2155 = vmatprep.subr.bf16.mxu0 %v2061
    %2156 = vmatpush1.bf16.msra.mxu0 %v2060
    %2157 = vmatprep.subr.bf16.mxu0 %v2065
    %2158 = vmatpush1.bf16.msra.mxu0 %v2064
    %2159 = vmatprep.subr.bf16.mxu0 %v2069
    %2160 = vmatpush1.bf16.msra.mxu0 %v2068
    %2161 = vmatprep.subr.bf16.mxu0 0
    %2162 = vmatpush1.bf16.msra.mxu0 0
    %2163 = vmatprep.subr.bf16.mxu0 0
    %2164 = vmatpush1.bf16.msra.mxu0 0
    %2165 = vmatprep.subr.bf16.mxu0 0
    %2166 = vmatpush1.bf16.msra.mxu0 0
    %2167 = vmatprep.subr.bf16.mxu0 0
    %2168 = vmatpush1.bf16.msra.mxu0 0
    %2169 = vmatprep.subr.bf16.mxu0 0
    %2170 = vmatpush1.bf16.msra.mxu0 0
    %2171 = vmatprep.subr.bf16.mxu0 0
    %2172 = vmatpush1.bf16.msra.mxu0 0
    %2173 = vmatprep.subr.bf16.mxu0 0
    %2174 = vmatpush1.bf16.msra.mxu0 0
    %2175 = vmatprep.subr.bf16.mxu0 0
    %2176 = vmatpush1.bf16.msra.mxu0 0
    %2177 = vmatprep.mubr.bf16.mxu0 0
    %2178 = vmatmul.mubr.bf16.gmra.mrb[0].mxu0 %v1893
    %v2179 = vpop.f32.mrb[0].mxu0
    %v2180 = vadd.f32 %v1937, %v2179
    %v2181 = vpop.f32.mrb[0].mxu0
    %v2182 = vadd.f32 %v1941, %v2181
    %v2183 = vpop.f32.mrb[0].mxu0
    %v2184 = vadd.f32 %v1937, %v2183
    %v2185 = vpop.f32.mrb[0].mxu0
    %v2186 = vadd.f32 %v1941, %v2185
    %2187 = vdwg.mxu0
    %v2188 = vmul.f32 %v2137, 0.5
    %v2189 = vmul.f32 %v2139, 0.5
    %v2190 = vmul.f32 %v2180, 0.5
    %v2191 = vmul.f32 %v2182, 0.5
    %v2192 = vmul.f32 %v2141, 0.5
    %v2193 = vmul.f32 %v2143, 0.5
    %v2194 = vmul.f32 %v2184, 0.5
    %v2195 = vmul.f32 %v2186, 0.5
    %v2196 = vmul.f32 %v2137, 0.70710677
    %v2197 = vmul.f32 %v2139, 0.70710677
    %v2198 = vmul.f32 %v2180, 0.70710677
    %v2199 = vmul.f32 %v2182, 0.70710677
    %v2200 = vmul.f32 %v2141, 0.70710677
    %v2201 = vmul.f32 %v2143, 0.70710677
    %v2202 = vmul.f32 %v2184, 0.70710677
    %v2203 = vmul.f32 %v2186, 0.70710677
    %v2204 = verf.f32.pop %v2196
    %v2205 = verf.f32.pop %v2197
    %v2206 = verf.f32.pop %v2198
    %v2207 = verf.f32.pop %v2199
    %v2208 = verf.f32.pop %v2200
    %v2209 = verf.f32.pop %v2201
    %v2210 = verf.f32.pop %v2202
    %v2211 = verf.f32.pop %v2203
    %v2212 = vadd.f32 %v2204, 1.0
    %v2213 = vadd.f32 %v2205, 1.0
    %v2214 = vadd.f32 %v2206, 1.0
    %v2215 = vadd.f32 %v2207, 1.0
    %v2216 = vadd.f32 %v2208, 1.0
    %v2217 = vadd.f32 %v2209, 1.0
    %v2218 = vadd.f32 %v2210, 1.0
    %v2219 = vadd.f32 %v2211, 1.0
    %v2220 = vmul.f32 %v2188, %v2212
    %v2221 = vmul.f32 %v2189, %v2213
    %v2222 = vmul.f32 %v2190, %v2214
    %v2223 = vmul.f32 %v2191, %v2215
    %v2224 = vmul.f32 %v2192, %v2216
    %v2225 = vmul.f32 %v2193, %v2217
    %v2226 = vmul.f32 %v2194, %v2218
    %v2227 = vmul.f32 %v2195, %v2219
    %v2228 = vpack.c.bf16 %v2224, %v2220
    %v2229 = vpack.c.bf16 %v2225, %v2221
    %v2230 = vpack.c.bf16 %v2226, %v2222
    %v2231 = vpack.c.bf16 %v2227, %v2223
    %v2232 = vld [vmem:[#allocation9] sm:$0xf]
    %v2233 = vld [vmem:[#allocation9 + $0x4] sm:$0xf]
    %v2234 = vld [vmem:[#allocation9 + $0x8] sm:$0xf]
    %v2235 = vld [vmem:[#allocation9 + $0xc] sm:$0xf]
    %v2236 = vld [vmem:[#allocation9 + $0x10] sm:$0xf]
    %v2237 = vld [vmem:[#allocation9 + $0x14] sm:$0xf]
    %v2238 = vld [vmem:[#allocation9 + $0x18] sm:$0xf]
    %v2239 = vld [vmem:[#allocation9 + $0x1c] sm:$0xf]
    %v2240 = vld [vmem:[#allocation9 + $0x20] sm:$0xf]
    %v2241 = vld [vmem:[#allocation9 + $0x24] sm:$0xf]
    %v2242 = vld [vmem:[#allocation9 + $0x28] sm:$0xf]
    %v2243 = vld [vmem:[#allocation9 + $0x2c] sm:$0xf]
    %v2244 = vld [vmem:[#allocation9 + $0x30] sm:$0xf]
    %v2245 = vld [vmem:[#allocation9 + $0x34] sm:$0xf]
    %v2246 = vld [vmem:[#allocation9 + $0x38] sm:$0xf]
    %v2247 = vld [vmem:[#allocation9 + $0x3c] sm:$0xf]
    %v2248 = vld [vmem:[#allocation9 + $0x40] sm:$0xf]
    %v2249 = vld [vmem:[#allocation9 + $0x44] sm:$0xf]
    %v2250 = vld [vmem:[#allocation9 + $0x48] sm:$0xf]
    %v2251 = vld [vmem:[#allocation9 + $0x4c] sm:$0xf]
    %v2252 = vld [vmem:[#allocation9 + $0x50] sm:$0xf]
    %v2253 = vld [vmem:[#allocation9 + $0x54] sm:$0xf]
    %v2254 = vld [vmem:[#allocation9 + $0x58] sm:$0xf]
    %v2255 = vld [vmem:[#allocation9 + $0x5c] sm:$0xf]
    %v2256 = vld [vmem:[#allocation9 + $0x60] sm:$0xf]
    %v2257 = vld [vmem:[#allocation9 + $0x64] sm:$0xf]
    %v2258 = vld [vmem:[#allocation9 + $0x68] sm:$0xf]
    %v2259 = vld [vmem:[#allocation9 + $0x6c] sm:$0xf]
    %v2260 = vld [vmem:[#allocation9 + $0x70] sm:$0xf]
    %v2261 = vld [vmem:[#allocation9 + $0x74] sm:$0xf]
    %v2262 = vld [vmem:[#allocation9 + $0x78] sm:$0xf]
    %v2263 = vld [vmem:[#allocation9 + $0x7c] sm:$0xf]
    %v2264 = vld [vmem:[#allocation9 + $0x80] sm:$0xf]
    %v2265 = vld [vmem:[#allocation9 + $0x84] sm:$0xf]
    %v2266 = vld [vmem:[#allocation9 + $0x88] sm:$0xf]
    %v2267 = vld [vmem:[#allocation9 + $0x8c] sm:$0xf]
    %v2268 = vld [vmem:[#allocation9 + $0x90] sm:$0xf]
    %v2269 = vld [vmem:[#allocation9 + $0x94] sm:$0xf]
    %v2270 = vld [vmem:[#allocation9 + $0x98] sm:$0xf]
    %v2271 = vld [vmem:[#allocation9 + $0x9c] sm:$0xf]
    %v2272 = vld [vmem:[#allocation9 + $0xa0] sm:$0xf]
    %v2273 = vld [vmem:[#allocation9 + $0xa4] sm:$0xf]
    %v2274 = vld [vmem:[#allocation9 + $0xa8] sm:$0xf]
    %v2275 = vld [vmem:[#allocation9 + $0xac] sm:$0xf]
    %v2276 = vld [vmem:[#allocation9 + $0xb0] sm:$0xf]
    %v2277 = vld [vmem:[#allocation9 + $0xb4] sm:$0xf]
    %v2278 = vld [vmem:[#allocation9 + $0xb8] sm:$0xf]
    %v2279 = vld [vmem:[#allocation9 + $0xbc] sm:$0xf]
    %v2280 = vld [vmem:[#allocation9 + $0xc0] sm:$0xf]
    %v2281 = vld [vmem:[#allocation9 + $0xc4] sm:$0xf]
    %v2282 = vld [vmem:[#allocation9 + $0xc8] sm:$0xf]
    %v2283 = vld [vmem:[#allocation9 + $0xcc] sm:$0xf]
    %v2284 = vld [vmem:[#allocation9 + $0xd0] sm:$0xf]
    %v2285 = vld [vmem:[#allocation9 + $0xd4] sm:$0xf]
    %v2286 = vld [vmem:[#allocation9 + $0xd8] sm:$0xf]
    %v2287 = vld [vmem:[#allocation9 + $0xdc] sm:$0xf]
    %v2288 = vld [vmem:[#allocation9 + $0xe0] sm:$0xf]
    %v2289 = vld [vmem:[#allocation9 + $0xe4] sm:$0xf]
    %v2290 = vld [vmem:[#allocation9 + $0xe8] sm:$0xf]
    %v2291 = vld [vmem:[#allocation9 + $0xec] sm:$0xf]
    %v2292 = vld [vmem:[#allocation9 + $0xf0] sm:$0xf]
    %v2293 = vld [vmem:[#allocation9 + $0xf4] sm:$0xf]
    %v2294 = vld [vmem:[#allocation9 + $0xf8] sm:$0xf]
    %v2295 = vld [vmem:[#allocation9 + $0xfc] sm:$0xf]
    %v2296 = vlaneseq
    %v2297 = vshrl.u32 %v2296, 7
    %v2298 = vsub.s32 5, %v2297
    %v2299 = vrot.slane %v130, %v2298
    %v2364 = vunpack.c.l.b16 %v2232
    %v2365 = vunpack.c.l.b16 %v2233
    %v2366 = vunpack.c.l.b16 %v2234
    %v2367 = vunpack.c.l.b16 %v2235
    %v2368 = vunpack.c.l.b16 %v2236
    %v2369 = vunpack.c.l.b16 %v2237
    %v2370 = vunpack.c.l.b16 %v2238
    %v2371 = vunpack.c.l.b16 %v2239
    %v2372 = vunpack.c.l.b16 %v2240
    %v2373 = vunpack.c.l.b16 %v2241
    %v2374 = vunpack.c.l.b16 %v2242
    %v2375 = vunpack.c.l.b16 %v2243
    %v2376 = vunpack.c.l.b16 %v2244
    %v2377 = vunpack.c.l.b16 %v2245
    %v2378 = vunpack.c.l.b16 %v2246
    %v2379 = vunpack.c.l.b16 %v2247
    %v2380 = vunpack.c.l.b16 %v2248
    %v2381 = vunpack.c.l.b16 %v2249
    %v2382 = vunpack.c.l.b16 %v2250
    %v2383 = vunpack.c.l.b16 %v2251
    %v2384 = vunpack.c.l.b16 %v2252
    %v2385 = vunpack.c.l.b16 %v2253
    %v2386 = vunpack.c.l.b16 %v2254
    %v2387 = vunpack.c.l.b16 %v2255
    %v2388 = vunpack.c.l.b16 %v2256
    %v2389 = vunpack.c.l.b16 %v2257
    %v2390 = vunpack.c.l.b16 %v2258
    %v2391 = vunpack.c.l.b16 %v2259
    %v2392 = vunpack.c.l.b16 %v2260
    %v2393 = vunpack.c.l.b16 %v2261
    %v2394 = vunpack.c.l.b16 %v2262
    %v2395 = vunpack.c.l.b16 %v2263
    %v2396 = vunpack.c.l.b16 %v2264
    %v2397 = vunpack.c.l.b16 %v2265
    %v2398 = vunpack.c.l.b16 %v2266
    %v2399 = vunpack.c.l.b16 %v2267
    %v2400 = vunpack.c.l.b16 %v2268
    %v2401 = vunpack.c.l.b16 %v2269
    %v2402 = vunpack.c.l.b16 %v2270
    %v2403 = vunpack.c.l.b16 %v2271
    %v2404 = vunpack.c.l.b16 %v2272
    %v2405 = vunpack.c.l.b16 %v2273
    %v2406 = vunpack.c.l.b16 %v2274
    %v2407 = vunpack.c.l.b16 %v2275
    %v2408 = vunpack.c.l.b16 %v2276
    %v2409 = vunpack.c.l.b16 %v2277
    %v2410 = vunpack.c.l.b16 %v2278
    %v2411 = vunpack.c.l.b16 %v2279
    %v2412 = vunpack.c.l.b16 %v2280
    %v2413 = vunpack.c.l.b16 %v2281
    %v2414 = vunpack.c.l.b16 %v2282
    %v2415 = vunpack.c.l.b16 %v2283
    %v2416 = vunpack.c.l.b16 %v2284
    %v2417 = vunpack.c.l.b16 %v2285
    %v2418 = vunpack.c.l.b16 %v2286
    %v2419 = vunpack.c.l.b16 %v2287
    %v2420 = vunpack.c.l.b16 %v2288
    %v2421 = vunpack.c.l.b16 %v2289
    %v2422 = vunpack.c.l.b16 %v2290
    %v2423 = vunpack.c.l.b16 %v2291
    %v2424 = vunpack.c.l.b16 %v2292
    %v2425 = vunpack.c.l.b16 %v2293
    %v2426 = vunpack.c.l.b16 %v2294
    %v2427 = vunpack.c.l.b16 %v2295
    %v2428 = vpack.c.b16 %v2365, %v2364
    %v2429 = vpack.c.b16 %v2367, %v2366
    %v2430 = vpack.c.b16 %v2369, %v2368
    %v2431 = vpack.c.b16 %v2371, %v2370
    %v2432 = vpack.c.b16 %v2373, %v2372
    %v2433 = vpack.c.b16 %v2375, %v2374
    %v2434 = vpack.c.b16 %v2377, %v2376
    %v2435 = vpack.c.b16 %v2379, %v2378
    %v2436 = vpack.c.b16 %v2381, %v2380
    %v2437 = vpack.c.b16 %v2383, %v2382
    %v2438 = vpack.c.b16 %v2385, %v2384
    %v2439 = vpack.c.b16 %v2387, %v2386
    %v2440 = vpack.c.b16 %v2389, %v2388
    %v2441 = vpack.c.b16 %v2391, %v2390
    %v2442 = vpack.c.b16 %v2393, %v2392
    %v2443 = vpack.c.b16 %v2395, %v2394
    %v2444 = vpack.c.b16 %v2397, %v2396
    %v2445 = vpack.c.b16 %v2399, %v2398
    %v2446 = vpack.c.b16 %v2401, %v2400
    %v2447 = vpack.c.b16 %v2403, %v2402
    %v2448 = vpack.c.b16 %v2405, %v2404
    %v2449 = vpack.c.b16 %v2407, %v2406
    %v2450 = vpack.c.b16 %v2409, %v2408
    %v2451 = vpack.c.b16 %v2411, %v2410
    %v2452 = vpack.c.b16 %v2413, %v2412
    %v2453 = vpack.c.b16 %v2415, %v2414
    %v2454 = vpack.c.b16 %v2417, %v2416
    %v2455 = vpack.c.b16 %v2419, %v2418
    %v2456 = vpack.c.b16 %v2421, %v2420
    %v2457 = vpack.c.b16 %v2423, %v2422
    %v2458 = vpack.c.b16 %v2425, %v2424
    %v2459 = vpack.c.b16 %v2427, %v2426
    %2492 = vmatprep.subr.bf16.mxu0 0
    %2493 = vmatpush1.bf16.msra.mxu0 %v2428
    %2494 = vmatprep.subr.bf16.mxu0 0
    %2495 = vmatpush1.bf16.msra.mxu0 %v2429
    %2496 = vmatprep.subr.bf16.mxu0 0
    %2497 = vmatpush1.bf16.msra.mxu0 %v2430
    %2498 = vmatprep.subr.bf16.mxu0 0
    %2499 = vmatpush1.bf16.msra.mxu0 %v2431
    %2500 = vmatprep.subr.bf16.mxu0 0
    %2501 = vmatpush1.bf16.msra.mxu0 %v2432
    %2502 = vmatprep.subr.bf16.mxu0 0
    %2503 = vmatpush1.bf16.msra.mxu0 %v2433
    %2504 = vmatprep.subr.bf16.mxu0 0
    %2505 = vmatpush1.bf16.msra.mxu0 %v2434
    %2506 = vmatprep.subr.bf16.mxu0 0
    %2507 = vmatpush1.bf16.msra.mxu0 %v2435
    %2508 = vmatprep.subr.bf16.mxu0 0
    %2509 = vmatpush1.bf16.msra.mxu0 %v2436
    %2510 = vmatprep.subr.bf16.mxu0 0
    %2511 = vmatpush1.bf16.msra.mxu0 %v2437
    %2512 = vmatprep.subr.bf16.mxu0 0
    %2513 = vmatpush1.bf16.msra.mxu0 %v2438
    %2514 = vmatprep.subr.bf16.mxu0 0
    %2515 = vmatpush1.bf16.msra.mxu0 %v2439
    %2516 = vmatprep.subr.bf16.mxu0 0
    %2517 = vmatpush1.bf16.msra.mxu0 %v2440
    %2518 = vmatprep.subr.bf16.mxu0 0
    %2519 = vmatpush1.bf16.msra.mxu0 %v2441
    %2520 = vmatprep.subr.bf16.mxu0 0
    %2521 = vmatpush1.bf16.msra.mxu0 %v2442
    %2522 = vmatprep.subr.bf16.mxu0 0
    %2523 = vmatpush1.bf16.msra.mxu0 %v2443
    %2524 = vmatprep.mubr.bf16.mxu0 %v2229
    %2525 = vmatmul.mubr.bf16.gmra.mrb[0].mxu0 %v2228
    %v2526 = vpop.f32.mrb[0].mxu0
    %v2527 = vadd.f32 %v2299, %v2526
    %v2528 = vpop.f32.mrb[0].mxu0
    %v2529 = vpop.f32.mrb[0].mxu0
    %v2530 = vadd.f32 %v2299, %v2529
    %v2531 = vpop.f32.mrb[0].mxu0
    %2532 = vdwg.mxu0
    %2533 = vmatprep.subr.bf16.mxu0 0
    %2534 = vmatpush1.bf16.msra.mxu0 %v2444
    %2535 = vmatprep.subr.bf16.mxu0 0
    %2536 = vmatpush1.bf16.msra.mxu0 %v2445
    %2537 = vmatprep.subr.bf16.mxu0 0
    %2538 = vmatpush1.bf16.msra.mxu0 %v2446
    %2539 = vmatprep.subr.bf16.mxu0 0
    %2540 = vmatpush1.bf16.msra.mxu0 %v2447
    %2541 = vmatprep.subr.bf16.mxu0 0
    %2542 = vmatpush1.bf16.msra.mxu0 %v2448
    %2543 = vmatprep.subr.bf16.mxu0 0
    %2544 = vmatpush1.bf16.msra.mxu0 %v2449
    %2545 = vmatprep.subr.bf16.mxu0 0
    %2546 = vmatpush1.bf16.msra.mxu0 %v2450
    %2547 = vmatprep.subr.bf16.mxu0 0
    %2548 = vmatpush1.bf16.msra.mxu0 %v2451
    %2549 = vmatprep.subr.bf16.mxu0 0
    %2550 = vmatpush1.bf16.msra.mxu0 %v2452
    %2551 = vmatprep.subr.bf16.mxu0 0
    %2552 = vmatpush1.bf16.msra.mxu0 %v2453
    %2553 = vmatprep.subr.bf16.mxu0 0
    %2554 = vmatpush1.bf16.msra.mxu0 %v2454
    %2555 = vmatprep.subr.bf16.mxu0 0
    %2556 = vmatpush1.bf16.msra.mxu0 %v2455
    %2557 = vmatprep.subr.bf16.mxu0 0
    %2558 = vmatpush1.bf16.msra.mxu0 %v2456
    %2559 = vmatprep.subr.bf16.mxu0 0
    %2560 = vmatpush1.bf16.msra.mxu0 %v2457
    %2561 = vmatprep.subr.bf16.mxu0 0
    %2562 = vmatpush1.bf16.msra.mxu0 %v2458
    %2563 = vmatprep.subr.bf16.mxu0 0
    %2564 = vmatpush1.bf16.msra.mxu0 %v2459
    %2565 = vmatprep.mubr.bf16.mxu0 %v2231
    %2566 = vmatmul.mubr.bf16.gmra.mrb[0].mxu0 %v2230
    %v2567 = vpop.f32.mrb[0].mxu0
    %v2568 = vadd.f32 %v2527, %v2567
    %v2569 = vpop.f32.mrb[0].mxu0
    %v2570 = vpop.f32.mrb[0].mxu0
    %v2571 = vadd.f32 %v2530, %v2570
    %v2572 = vpop.f32.mrb[0].mxu0
    %2573 = vdwg.mxu0
    %v2574 = vadd.f32 %v1891, %v2568
    %v2575 = vadd.f32 %v1892, %v2571
    %v2576 = vpack.c.bf16 %v2575, %v2574
    %v2577 = vld [vmem:[#allocation10] sm:$0xf]
    %v2578 = vld [vmem:[#allocation10 + $0x4] sm:$0xf]
    %v2579 = vld [vmem:[#allocation10 + $0x8] sm:$0xf]
    %v2580 = vld [vmem:[#allocation10 + $0xc] sm:$0xf]
    %v2581 = vld [vmem:[#allocation10 + $0x10] sm:$0xf]
    %v2582 = vld [vmem:[#allocation10 + $0x14] sm:$0xf]
    %v2583 = vld [vmem:[#allocation10 + $0x18] sm:$0xf]
    %v2584 = vld [vmem:[#allocation10 + $0x1c] sm:$0xf]
    %v2585 = vld [vmem:[#allocation10 + $0x20] sm:$0xf]
    %v2586 = vld [vmem:[#allocation10 + $0x24] sm:$0xf]
    %v2587 = vld [vmem:[#allocation10 + $0x28] sm:$0xf]
    %v2588 = vld [vmem:[#allocation10 + $0x2c] sm:$0xf]
    %v2589 = vld [vmem:[#allocation10 + $0x30] sm:$0xf]
    %v2590 = vld [vmem:[#allocation10 + $0x34] sm:$0xf]
    %v2591 = vld [vmem:[#allocation10 + $0x38] sm:$0xf]
    %v2592 = vld [vmem:[#allocation10 + $0x3c] sm:$0xf]
    %v2593 = vlaneseq
    %v2594 = vshrl.u32 %v2593, 7
    %v2595 = vsub.s32 6, %v2594
    %v2596 = vrot.slane %v130, %v2595
    %v2613 = vunpack.c.l.b16 %v2577
    %v2614 = vunpack.c.l.b16 %v2578
    %v2615 = vunpack.c.l.b16 %v2579
    %v2616 = vunpack.c.l.b16 %v2580
    %v2617 = vunpack.c.l.b16 %v2581
    %v2618 = vunpack.c.l.b16 %v2582
    %v2619 = vunpack.c.l.b16 %v2583
    %v2620 = vunpack.c.l.b16 %v2584
    %v2621 = vunpack.c.l.b16 %v2585
    %v2622 = vunpack.c.l.b16 %v2586
    %v2623 = vunpack.c.l.b16 %v2587
    %v2624 = vunpack.c.l.b16 %v2588
    %v2625 = vunpack.c.l.b16 %v2589
    %v2626 = vunpack.c.l.b16 %v2590
    %v2627 = vunpack.c.l.b16 %v2591
    %v2628 = vunpack.c.l.b16 %v2592
    %v2629 = vpack.c.b16 %v2614, %v2613
    %v2630 = vpack.c.b16 %v2616, %v2615
    %v2631 = vpack.c.b16 %v2618, %v2617
    %v2632 = vpack.c.b16 %v2620, %v2619
    %v2633 = vpack.c.b16 %v2622, %v2621
    %v2634 = vpack.c.b16 %v2624, %v2623
    %v2635 = vpack.c.b16 %v2626, %v2625
    %v2636 = vpack.c.b16 %v2628, %v2627
    %2645 = vmatprep.subr.bf16.mxu0 0
    %2646 = vmatpush1.bf16.msra.mxu0 %v2629
    %2647 = vmatprep.subr.bf16.mxu0 0
    %2648 = vmatpush1.bf16.msra.mxu0 %v2630
    %2649 = vmatprep.subr.bf16.mxu0 0
    %2650 = vmatpush1.bf16.msra.mxu0 %v2631
    %2651 = vmatprep.subr.bf16.mxu0 0
    %2652 = vmatpush1.bf16.msra.mxu0 %v2632
    %2653 = vmatprep.subr.bf16.mxu0 0
    %2654 = vmatpush1.bf16.msra.mxu0 %v2633
    %2655 = vmatprep.subr.bf16.mxu0 0
    %2656 = vmatpush1.bf16.msra.mxu0 %v2634
    %2657 = vmatprep.subr.bf16.mxu0 0
    %2658 = vmatpush1.bf16.msra.mxu0 %v2635
    %2659 = vmatprep.subr.bf16.mxu0 0
    %2660 = vmatpush1.bf16.msra.mxu0 %v2636
    %2661 = vmatprep.subr.bf16.mxu0 0
    %2662 = vmatpush1.bf16.msra.mxu0 0
    %2663 = vmatprep.subr.bf16.mxu0 0
    %2664 = vmatpush1.bf16.msra.mxu0 0
    %2665 = vmatprep.subr.bf16.mxu0 0
    %2666 = vmatpush1.bf16.msra.mxu0 0
    %2667 = vmatprep.subr.bf16.mxu0 0
    %2668 = vmatpush1.bf16.msra.mxu0 0
    %2669 = vmatprep.subr.bf16.mxu0 0
    %2670 = vmatpush1.bf16.msra.mxu0 0
    %2671 = vmatprep.subr.bf16.mxu0 0
    %2672 = vmatpush1.bf16.msra.mxu0 0
    %2673 = vmatprep.subr.bf16.mxu0 0
    %2674 = vmatpush1.bf16.msra.mxu0 0
    %2675 = vmatprep.subr.bf16.mxu0 0
    %2676 = vmatpush1.bf16.msra.mxu0 0
    %2677 = vmatprep.mubr.bf16.mxu0 0
    %2678 = vmatmul.mubr.bf16.gmra.mrb[0].mxu0 %v2576
    %v2679 = vpop.f32.mrb[0].mxu0
    %v2680 = vadd.f32 %v2596, %v2679
    %v2681 = vpop.f32.mrb[0].mxu0
    %v2682 = vpop.f32.mrb[0].mxu0
    %v2683 = vadd.f32 %v2596, %v2682
    %v2684 = vpop.f32.mrb[0].mxu0
    %2685 = vdwg.mxu0
    %2686 = vst [vmem:[%s10] sm:$0xff] %v2680
    %2687 = vst [vmem:[%s10 + $0x8] sm:$0xff] %v2683
    // Predicated region
    $region70: #{financial_transformer_forward.1} parent=1 // pred_check
      _
    $region71: #{financial_transformer_forward.1} parent=1 // pred_check_branch
      %2689 = sbr.rel (0) target = $region73
    $region72: #{financial_transformer_forward.1} parent=1 // pred_region
      _
    $region73: #{financial_transformer_forward.1} parent=1 // pred_fallthru
      _
    // Predicated region
    $region74: #{financial_transformer_forward.1} parent=1 // pred_check
      _
    $region75: #{financial_transformer_forward.1} parent=1 // pred_check_branch
      %2691 = sbr.rel (0) target = $region77
    $region76: #{financial_transformer_forward.1} parent=1 // pred_region
      _
    $region77: #{financial_transformer_forward.1} parent=1 // pred_fallthru
      _
    %2692 = vsyncpa [#allocation3], 1
    %2693 = vsyncpa [#allocation5], 1
    %2694 = vsyncpa [#allocation8], 1
    %2695 = vsyncpa [#allocation11], 1

</llo_original>
